<compile_context>
chip_gen: v7x
topology: tpu7x:2x2x1
jax: 0.10.0
libtpu: 0.0.40
codegen_flags: <defaults>
</compile_context>

<pallas_src>
import functools

import numpy as np
import jax
import jax.numpy as jnp
from jax.experimental import pallas as pl
from jax.experimental.pallas import tpu as pltpu


def _ru(x, m):
    return ((x + m - 1) // m) * m


def _pick_tile(dim, candidates):
    """Pick the tile (from descending candidates) minimizing padding; prefer larger tiles."""
    best_t, best_p = candidates[0], _ru(dim, candidates[0])
    for t in candidates[1:]:
        p = _ru(dim, t)
        if p < best_p:
            best_t, best_p = t, p
    return best_t, best_p


# ----------------------------- Pallas kernels ---------------------------------------

def _mm_kernel(a_ref, b_ref, c_ref, o_ref, acc_ref, *, relu):
    k = pl.program_id(2)

    @pl.when(k == 0)
    def _():
        acc_ref[...] = jnp.zeros_like(acc_ref)

    acc_ref[...] += jnp.dot(a_ref[...], b_ref[...], preferred_element_type=jnp.float32)

    @pl.when(k == pl.num_programs(2) - 1)
    def _():
        y = acc_ref[...] + c_ref[...]              # bias broadcast along lanes, f32
        if relu:
            y = jnp.maximum(y, 0.0)
        o_ref[...] = y.astype(o_ref.dtype)


def _mm_res_kernel(a_ref, b_ref, c_ref, r_ref, o_ref, acc_ref, *, relu):
    k = pl.program_id(2)

    @pl.when(k == 0)
    def _():
        acc_ref[...] = jnp.zeros_like(acc_ref)

    acc_ref[...] += jnp.dot(a_ref[...], b_ref[...], preferred_element_type=jnp.float32)

    @pl.when(k == pl.num_programs(2) - 1)
    def _():
        y = acc_ref[...] + c_ref[...] + r_ref[...].astype(jnp.float32)
        if relu:
            y = jnp.maximum(y, 0.0)
        o_ref[...] = y.astype(o_ref.dtype)


@functools.partial(jax.jit, static_argnames=("relu", "out_dtype"))
def matmul_bias(a, b, bias, residual=None, *, relu=False, out_dtype=jnp.bfloat16):
    """maybe_relu(a @ b + bias[:, None] [+ residual]).

    a: (R, K) weight-like operand, b: (K, M) activation operand (M = spatial, lane dim),
    bias: (R,).  bf16 operands, f32 accumulation and epilogue, output in out_dtype.
    """
    R, K = a.shape
    M = b.shape[1]
    tr, Rp = _pick_tile(R, (256, 128, 64, 32, 16, 8))
    tk, Kp = _pick_tile(K, (1024, 512, 256, 128))
    tn, Mp = _pick_tile(M, (512, 256, 128))

    a_p = a.astype(jnp.bfloat16)
    if (Rp, Kp) != (R, K):
        a_p = jnp.pad(a_p, ((0, Rp - R), (0, Kp - K)))
    b_p = b.astype(jnp.bfloat16)
    if (Kp, Mp) != (K, M):
        b_p = jnp.pad(b_p, ((0, Kp - K), (0, Mp - M)))
    c_p = bias.astype(jnp.float32).reshape(R, 1)
    if Rp != R:
        c_p = jnp.pad(c_p, ((0, Rp - R), (0, 0)))

    in_specs = [
        pl.BlockSpec((tr, tk), lambda i, j, k: (i, k)),
        pl.BlockSpec((tk, tn), lambda i, j, k: (k, j)),
        pl.BlockSpec((tr, 1), lambda i, j, k: (i, 0)),
    ]
    args = [a_p, b_p, c_p]
    if residual is not None:
        r_p = residual.astype(jnp.bfloat16)
        if (Rp, Mp) != (R, M):
            r_p = jnp.pad(r_p, ((0, Rp - R), (0, Mp - M)))
        in_specs.append(pl.BlockSpec((tr, tn), lambda i, j, k: (i, j)))
        args.append(r_p)
        kernel = functools.partial(_mm_res_kernel, relu=relu)
    else:
        kernel = functools.partial(_mm_kernel, relu=relu)

    out = pl.pallas_call(
        kernel,
        out_shape=jax.ShapeDtypeStruct((Rp, Mp), out_dtype),
        grid_spec=pltpu.PrefetchScalarGridSpec(
            num_scalar_prefetch=0,
            grid=(Rp // tr, Mp // tn, Kp // tk),
            in_specs=in_specs,
            out_specs=pl.BlockSpec((tr, tn), lambda i, j, k: (i, j)),
            scratch_shapes=[pltpu.VMEM((tr, tn), jnp.float32)],
        ),
        compiler_params=pltpu.CompilerParams(
            dimension_semantics=("parallel", "parallel", "arbitrary"),
            vmem_limit_bytes=32 * 1024 * 1024),
    )(*args)
    if (Rp, Mp) != (R, M):
        out = out[:R, :M]
    return out


def _gmm_kernel(w_ref, p_ref, c_ref, o_ref, *, relu):
    # w: (1, cout_pg, Kg)  p: (1, Kg, tn)  c: (1, cout_pg, 1)  o: (1, cout_pg, tn)
    y = jnp.dot(w_ref[0], p_ref[0], preferred_element_type=jnp.float32)
    y = y + c_ref[0]
    if relu:
        y = jnp.maximum(y, 0.0)
    o_ref[0] = y.astype(o_ref.dtype)


@functools.partial(jax.jit, static_argnames=("relu",))
def grouped_matmul_bias(wg, pg, cg, *, relu=True):
    """Per-group matmul with the spatial dim in lanes.

    wg: (G, cout_pg, Kg)  pg: (G, Kg, M)  cg: (G, cout_pg, 1) -> (G*cout_pg, M)."""
    G, cout_pg, Kg = wg.shape
    M = pg.shape[2]
    tn, Mp = _pick_tile(M, (512, 256, 128))
    pg_b = pg.astype(jnp.bfloat16)
    if Mp != M:
        pg_b = jnp.pad(pg_b, ((0, 0), (0, 0), (0, Mp - M)))
    wg_b = wg.astype(jnp.bfloat16)
    cg_f = cg.astype(jnp.float32)

    out = pl.pallas_call(
        functools.partial(_gmm_kernel, relu=relu),
        out_shape=jax.ShapeDtypeStruct((G, cout_pg, Mp), jnp.bfloat16),
        grid_spec=pltpu.PrefetchScalarGridSpec(
            num_scalar_prefetch=0,
            grid=(G, Mp // tn),
            in_specs=[
                pl.BlockSpec((1, cout_pg, Kg), lambda g, m: (g, 0, 0)),
                pl.BlockSpec((1, Kg, tn), lambda g, m: (g, 0, m)),
                pl.BlockSpec((1, cout_pg, 1), lambda g, m: (g, 0, 0)),
            ],
            out_specs=pl.BlockSpec((1, cout_pg, tn), lambda g, m: (g, 0, m)),
        ),
        compiler_params=pltpu.CompilerParams(
            dimension_semantics=("parallel", "parallel"),
            vmem_limit_bytes=32 * 1024 * 1024),
    )(wg_b, pg_b, cg_f)
    if Mp != M:
        out = out[:, :, :M]
    return out.reshape(G * cout_pg, M)


def _max9_kernel(x_ref, o_ref):
    o_ref[...] = jnp.max(x_ref[...], axis=0)


@jax.jit
def _max_over_taps(stacked):
    """Elementwise max over the leading 9-tap axis, tiled over the flattened axis."""
    T = stacked.shape[1]
    LANES, ROWS = 512, 32
    blk = LANES * ROWS
    Tp = _ru(T, blk)
    if Tp != T:
        stacked = jnp.pad(stacked, ((0, 0), (0, Tp - T)))
    st = stacked.reshape(9, Tp // LANES, LANES)
    out = pl.pallas_call(
        _max9_kernel,
        out_shape=jax.ShapeDtypeStruct((Tp // LANES, LANES), stacked.dtype),
        grid_spec=pltpu.PrefetchScalarGridSpec(
            num_scalar_prefetch=0,
            grid=(Tp // blk,),
            in_specs=[pl.BlockSpec((9, ROWS, LANES), lambda i: (0, i, 0))],
            out_specs=pl.BlockSpec((ROWS, LANES), lambda i: (i, 0)),
        ),
        compiler_params=pltpu.CompilerParams(dimension_semantics=("parallel",)),
    )(st)
    return out.reshape(Tp)[:T]


# ----------------------------- conv / pool / resize wrappers ------------------------

def extract_patches_cm(x, kh, kw, stride, padding):
    """x: (C, B, H, W) -> patches (C*kh*kw, B*Ho*Wo), K ordered (c, ky, kx)."""
    C, B, H, W = x.shape
    if padding > 0:
        x = jnp.pad(x, ((0, 0), (0, 0), (padding, padding), (padding, padding)))
    Hp, Wp = H + 2 * padding, W + 2 * padding
    Ho = (Hp - kh) // stride + 1
    Wo = (Wp - kw) // stride + 1
    taps = []
    for ky in range(kh):
        for kx in range(kw):
            taps.append(x[:, :, ky:ky + stride * (Ho - 1) + 1:stride,
                              kx:kx + stride * (Wo - 1) + 1:stride])
    p = jnp.stack(taps, axis=1)                      # (C, kh*kw, B, Ho, Wo)
    return p.reshape(C * kh * kw, B * Ho * Wo), Ho, Wo


def conv2d(x, wf, bias, *, stride=1, padding=0, relu=False, residual=None,
           out_dtype=jnp.bfloat16):
    """Dense conv in CM layout.  x:(Cin,B,H,W)  wf:(Cout,Cin,kh,kw) (BN-folded, bf16)."""
    Cin, B, H, W = x.shape
    Cout, _, kh, kw = wf.shape
    if kh == 1 and kw == 1:
        if stride > 1:
            x = x[:, :, ::stride, ::stride]
        Ho, Wo = x.shape[2], x.shape[3]
        patches = x.reshape(Cin, B * Ho * Wo)
    else:
        patches, Ho, Wo = extract_patches_cm(x, kh, kw, stride, padding)
    wm = wf.reshape(Cout, Cin * kh * kw)
    res = residual.reshape(Cout, B * Ho * Wo) if residual is not None else None
    out = matmul_bias(wm, patches, bias, res, relu=relu, out_dtype=out_dtype)
    return out.reshape(Cout, B, Ho, Wo)


def grouped_conv2d(x, wf, bias, *, stride, padding, groups, relu=True):
    """Grouped 3x3 conv in CM layout.  wf:(Cout,cin_pg,kh,kw) BN-folded bf16."""
    Cin, B, H, W = x.shape
    Cout, cin_pg, kh, kw = wf.shape
    cout_pg = Cout // groups
    patches, Ho, Wo = extract_patches_cm(x, kh, kw, stride, padding)   # (Cin*kh*kw, M)
    M = B * Ho * Wo
    pg = patches.reshape(groups, cin_pg * kh * kw, M)
    wg = wf.reshape(groups, cout_pg, cin_pg * kh * kw)
    cg = bias.reshape(groups, cout_pg, 1)
    out = grouped_matmul_bias(wg, pg, cg, relu=relu)                   # (Cout, M)
    return out.reshape(Cout, B, Ho, Wo)


def maxpool2d_3x3_s2_p1(x):
    C, B, H, W = x.shape
    neg = jnp.finfo(x.dtype).min
    xp = jnp.pad(x, ((0, 0), (0, 0), (1, 1), (1, 1)), constant_values=neg)
    Ho = (H + 2 - 3) // 2 + 1
    Wo = (W + 2 - 3) // 2 + 1
    taps = []
    for i in range(3):
        for j in range(3):
            taps.append(xp[:, :, i:i + 2 * (Ho - 1) + 1:2, j:j + 2 * (Wo - 1) + 1:2])
    st = jnp.stack(taps, axis=0).reshape(9, C * B * Ho * Wo)
    out = _max_over_taps(st)
    return out.reshape(C, B, Ho, Wo)


def conv_transpose_2x2_s2(x, up):
    """ConvTranspose2d(k=2, s=2) in CM layout via one matmul + pixel shuffle."""
    Cin, B, H, W = x.shape
    Cout = up["cout"]
    out4 = matmul_bias(up["wm"], x.reshape(Cin, B * H * W), up["b4"],
                       relu=False, out_dtype=jnp.bfloat16)      # (4*Cout, M)
    out4 = out4.reshape(2, 2, Cout, B, H, W).transpose(2, 3, 4, 0, 5, 1)
    return out4.reshape(Cout, B, 2 * H, 2 * W)


def _bilinear_matrix(in_size, out_size):
    # matches torch.nn.functional.interpolate(mode="bilinear", align_corners=False)
    dst = np.arange(out_size, dtype=np.float64)
    src = (dst + 0.5) * (float(in_size) / float(out_size)) - 0.5
    src = np.maximum(src, 0.0)
    i0 = np.minimum(np.floor(src).astype(np.int64), in_size - 1)
    i1 = np.minimum(i0 + 1, in_size - 1)
    lam = src - i0
    W = np.zeros((out_size, in_size), dtype=np.float32)
    W[np.arange(out_size), i0] += (1.0 - lam)
    W[np.arange(out_size), i1] += lam
    return jnp.asarray(W)


def bilinear_resize_nchw(x, out_h, out_w):
    B, C, H, W = x.shape
    Wh = _bilinear_matrix(H, out_h)
    Ww = _bilinear_matrix(W, out_w)
    t = matmul_bias(x.reshape(B * C * H, W), Ww.T, jnp.zeros((B * C * H,), jnp.float32),
                    relu=False, out_dtype=jnp.float32)            # (B*C*H, out_w)
    t = t.reshape(B, C, H, out_w).transpose(0, 1, 3, 2).reshape(B * C * out_w, H)
    t = matmul_bias(t, Wh.T, jnp.zeros((B * C * out_w,), jnp.float32),
                    relu=False, out_dtype=jnp.float32)            # (B*C*out_w, out_h)
    return t.reshape(B, C, out_w, out_h).transpose(0, 1, 3, 2)


# ----------------------------- parameters (deterministic synthetic) -----------------

class KeyGen:
    def __init__(self, seed=0):
        self._key = jax.random.PRNGKey(seed)

    def __call__(self):
        self._key, sub = jax.random.split(self._key)
        return sub


def _conv_w(kg, cout, cin_pg, kh, kw):
    fan_in = cin_pg * kh * kw
    return jax.random.normal(kg(), (cout, cin_pg, kh, kw), jnp.float32) / np.sqrt(fan_in)


def _conv_b(kg, cout):
    return 0.01 * jax.random.normal(kg(), (cout,), jnp.float32)


def _bn(kg, c, eps=1e-5):
    gamma = 1.0 + 0.1 * jax.random.normal(kg(), (c,), jnp.float32)
    beta = 0.1 * jax.random.normal(kg(), (c,), jnp.float32)
    mean = 0.1 * jax.random.normal(kg(), (c,), jnp.float32)
    var = 1.0 + 0.1 * jnp.abs(jax.random.normal(kg(), (c,), jnp.float32))
    scale = gamma / jnp.sqrt(var + eps)
    shift = beta - mean * scale
    return scale, shift


def fold_conv_bn(w, bn, conv_bias=None):
    """Fold eval-mode BN (and optional conv bias) into (bf16 weight, f32 bias)."""
    scale, shift = bn
    wf = (w * scale[:, None, None, None]).astype(jnp.bfloat16)
    bias = shift if conv_bias is None else shift + conv_bias * scale
    return wf, bias.astype(jnp.float32)


def make_bottleneck(kg, inplanes, planes, stride, groups=32, base_width=8):
    width = int(planes * (base_width / 64.0)) * groups
    p = {"stride": stride, "groups": groups}
    p["w1"], p["b1"] = fold_conv_bn(_conv_w(kg, width, inplanes, 1, 1), _bn(kg, width))
    p["w2"], p["b2"] = fold_conv_bn(_conv_w(kg, width, width // groups, 3, 3), _bn(kg, width))
    p["w3"], p["b3"] = fold_conv_bn(_conv_w(kg, planes * 4, width, 1, 1), _bn(kg, planes * 4))
    if stride != 1 or inplanes != planes * 4:
        p["wd"], p["bd"] = fold_conv_bn(_conv_w(kg, planes * 4, inplanes, 1, 1),
                                        _bn(kg, planes * 4))
    else:
        p["wd"] = None
    return p


def make_layer(kg, inplanes, planes, blocks, stride):
    layer = [make_bottleneck(kg, inplanes, planes, stride)]
    for _ in range(blocks - 1):
        layer.append(make_bottleneck(kg, planes * 4, planes, 1))
    return layer


def make_convblock(kg, cin, cout):
    w1, cb1, bn1 = _conv_w(kg, cout, cin, 3, 3), _conv_b(kg, cout), _bn(kg, cout)
    w2, cb2, bn2 = _conv_w(kg, cout, cout, 3, 3), _conv_b(kg, cout), _bn(kg, cout)
    wf1, b1 = fold_conv_bn(w1, bn1, cb1)
    wf2, b2 = fold_conv_bn(w2, bn2, cb2)
    return {"w1": wf1, "b1": b1, "w2": wf2, "b2": b2}


def make_upconv(kg, cin, cout):
    w = jax.random.normal(kg(), (cin, cout, 2, 2), jnp.float32) / np.sqrt(cin * 4)
    b = _conv_b(kg, cout)
    wm = w.transpose(2, 3, 1, 0).reshape(4 * cout, cin).astype(jnp.bfloat16)
    b4 = jnp.tile(b, 4).astype(jnp.float32)
    return {"wm": wm, "b4": b4, "cout": cout}


def make_unetpp_params(num_classes, seed=0):
    kg = KeyGen(seed)
    P = {}
    P["stem_w"], P["stem_b"] = fold_conv_bn(_conv_w(kg, 64, 3, 7, 7), _bn(kg, 64))
    P["layer1"] = make_layer(kg, 64, 64, 3, 1)       # -> 256 ch,  H/4
    P["layer2"] = make_layer(kg, 256, 128, 4, 2)     # -> 512 ch,  H/8
    P["layer3"] = make_layer(kg, 512, 256, 23, 2)    # -> 1024 ch, H/16
    P["layer4"] = make_layer(kg, 1024, 512, 3, 2)    # -> 2048 ch, H/32
    P["up4"] = make_upconv(kg, 2048, 1024)
    P["conv4"] = make_convblock(kg, 2048, 1024)
    P["up3"] = make_upconv(kg, 1024, 512)
    P["conv3"] = make_convblock(kg, 1024, 512)
    P["up2"] = make_upconv(kg, 512, 256)
    P["conv2"] = make_convblock(kg, 512, 256)
    P["up1"] = make_upconv(kg, 256, 64)
    P["conv1"] = make_convblock(kg, 128, 64)
    P["final_w"] = _conv_w(kg, num_classes, 64, 1, 1).astype(jnp.bfloat16)
    P["final_b"] = _conv_b(kg, num_classes).astype(jnp.float32)
    return P


# ----------------------------- forward ----------------------------------------------

def bottleneck_forward(p, x):
    out = conv2d(x, p["w1"], p["b1"], relu=True)
    out = grouped_conv2d(out, p["w2"], p["b2"],
                         stride=p["stride"], padding=1, groups=p["groups"], relu=True)
    if p["wd"] is not None:
        identity = conv2d(x, p["wd"], p["bd"], stride=p["stride"], padding=0, relu=False)
    else:
        identity = x
    # conv3 + bn3 + residual add + ReLU fused in the matmul epilogue
    return conv2d(out, p["w3"], p["b3"], residual=identity, relu=True)


def convblock_forward(p, x):
    x = conv2d(x, p["w1"], p["b1"], stride=1, padding=1, relu=True)
    x = conv2d(x, p["w2"], p["b2"], stride=1, padding=1, relu=True)
    return x


def unetpp_forward(P, x_nchw):
    # internal layout: (C, B, H, W) so every conv is  W (Cout,K) @ X (K, B*H*W)
    x = x_nchw.transpose(1, 0, 2, 3).astype(jnp.bfloat16)
    # encoder (resnext101_32x8d)
    e1 = conv2d(x, P["stem_w"], P["stem_b"], stride=2, padding=3, relu=True)
    h = maxpool2d_3x3_s2_p1(e1)
    for blk in P["layer1"]:
        h = bottleneck_forward(blk, h)
    e2 = h
    for blk in P["layer2"]:
        h = bottleneck_forward(blk, h)
    e3 = h
    for blk in P["layer3"]:
        h = bottleneck_forward(blk, h)
    e4 = h
    for blk in P["layer4"]:
        h = bottleneck_forward(blk, h)
    e5 = h
    # decoder (plain single-path decoder, exactly as in the reference forward)
    d4 = conv_transpose_2x2_s2(e5, P["up4"])
    d4 = convblock_forward(P["conv4"], jnp.concatenate([d4, e4], axis=0))
    d3 = conv_transpose_2x2_s2(d4, P["up3"])
    d3 = convblock_forward(P["conv3"], jnp.concatenate([d3, e3], axis=0))
    d2 = conv_transpose_2x2_s2(d3, P["up2"])
    d2 = convblock_forward(P["conv2"], jnp.concatenate([d2, e2], axis=0))
    d1 = conv_transpose_2x2_s2(d2, P["up1"])
    d1 = convblock_forward(P["conv1"], jnp.concatenate([d1, e1], axis=0))
    out = conv2d(d1, P["final_w"], P["final_b"], relu=False, out_dtype=jnp.float32)
    out = out.transpose(1, 0, 2, 3)                    # (B, num_classes, h, w), tiny
    return bilinear_resize_nchw(out, 600, 800)


if __name__ == "__main__":
    num_classes = 3
    params = make_unetpp_params(num_classes, seed=0)
    x = jax.random.normal(jax.random.PRNGKey(0), (2, 3, 64, 64), jnp.float32)
    out = unetpp_forward(params, x)
    out = jax.block_until_ready(out)
    assert out.shape == (2, num_classes, 600, 800), out.shape
    assert bool(jnp.all(jnp.isfinite(out)))
    print("KERNEL_OK")
</pallas_src>

<mosaic_0001>
module attributes {stable_mosaic.version = 11 : i64} {
  func.func @_mm_kernel(%arg0: i32, %arg1: i32, %arg2: i32, %arg3: memref<64x256xbf16, #tpu.memory_space<vmem>>, %arg4: memref<256x512xbf16, #tpu.memory_space<vmem>>, %arg5: memref<64x1xf32, #tpu.memory_space<vmem>>, %arg6: memref<64x512xbf16, #tpu.memory_space<vmem>>, %arg7: memref<64x512xf32, #tpu.memory_space<vmem>>) attributes {dimension_semantics = [#tpu.dimension_semantics<parallel>, #tpu.dimension_semantics<parallel>, #tpu.dimension_semantics<arbitrary>], iteration_bounds = array<i64: 1, 4, 1>, scalar_prefetch = 0 : i64, scratch_operands = 1 : i64, tpu.core_type = #tpu.core_type<tc>, window_params = [{transform_indices = @transform_0, window_bounds = array<i64: 64, 256>}, {transform_indices = @transform_1, window_bounds = array<i64: 256, 512>}, {transform_indices = @transform_2, window_bounds = array<i64: 64, 1>}, {transform_indices = @transform_3, window_bounds = array<i64: 64, 512>}]} {
    %c0_i32 = arith.constant 0 : i32
    %0 = arith.cmpi eq, %arg2, %c0_i32 : i32
    %1 = arith.extui %0 : i1 to i32
    %c0_i32_0 = arith.constant 0 : i32
    %2 = arith.cmpi ne, %1, %c0_i32_0 : i32
    scf.if %2 {
      %cst_10 = arith.constant 0.000000e+00 : f32
      %12 = vector.broadcast %cst_10 : f32 to vector<64x512xf32>
      %c0_11 = arith.constant 0 : index
      %c0_12 = arith.constant 0 : index
      %13 = vector.load %arg7[%c0_11, %c0_12] : memref<64x512xf32, #tpu.memory_space<vmem>>, vector<64x512xf32>
      tpu.vector_store %arg7[%c0_11, %c0_12], %12 {strides = array<i32>} : memref<64x512xf32, #tpu.memory_space<vmem>>, vector<64x512xf32>,
    } else {
    }
    %c0 = arith.constant 0 : index
    %c0_1 = arith.constant 0 : index
    %3 = vector.load %arg7[%c0, %c0_1] : memref<64x512xf32, #tpu.memory_space<vmem>>, vector<64x512xf32>
    %c0_2 = arith.constant 0 : index
    %c0_3 = arith.constant 0 : index
    %4 = vector.load %arg3[%c0_2, %c0_3] : memref<64x256xbf16, #tpu.memory_space<vmem>>, vector<64x256xbf16>
    %c0_4 = arith.constant 0 : index
    %c0_5 = arith.constant 0 : index
    %5 = vector.load %arg4[%c0_4, %c0_5] : memref<256x512xbf16, #tpu.memory_space<vmem>>, vector<256x512xbf16>
    %cst = arith.constant dense<0.000000e+00> : vector<64x512xf32>
    %6 = tpu.matmul %4, %5, %cst {dimension_numbers = #tpu.dot_dimension_numbers<[1], [0], [0], [1], [0, 0, 1, 1], [], []>} : vector<64x256xbf16>, vector<256x512xbf16>, vector<64x512xf32> -> vector<64x512xf32>
    %7 = arith.addf %3, %6 : vector<64x512xf32>
    %c0_6 = arith.constant 0 : index
    %c0_7 = arith.constant 0 : index
    %8 = vector.load %arg7[%c0_6, %c0_7] : memref<64x512xf32, #tpu.memory_space<vmem>>, vector<64x512xf32>
    tpu.vector_store %arg7[%c0_6, %c0_7], %7 {strides = array<i32>} : memref<64x512xf32, #tpu.memory_space<vmem>>, vector<64x512xf32>,
    %c0_i32_8 = arith.constant 0 : i32
    %9 = arith.cmpi eq, %arg2, %c0_i32_8 : i32
    %10 = arith.extui %9 : i1 to i32
    %c0_i32_9 = arith.constant 0 : i32
    %11 = arith.cmpi ne, %10, %c0_i32_9 : i32
    scf.if %11 {
      %c0_10 = arith.constant 0 : index
      %c0_11 = arith.constant 0 : index
      %12 = vector.load %arg7[%c0_10, %c0_11] : memref<64x512xf32, #tpu.memory_space<vmem>>, vector<64x512xf32>
      %c0_12 = arith.constant 0 : index
      %c0_13 = arith.constant 0 : index
      %13 = vector.load %arg5[%c0_12, %c0_13] : memref<64x1xf32, #tpu.memory_space<vmem>>, vector<64x1xf32>
      %14 = vector.broadcast %13 : vector<64x1xf32> to vector<64x512xf32>
      %15 = arith.addf %12, %14 : vector<64x512xf32>
      %cst_14 = arith.constant 0.000000e+00 : f32
      %16 = vector.broadcast %cst_14 : f32 to vector<64x512xf32>
      %17 = arith.maximumf %15, %16 : vector<64x512xf32>
      %18 = arith.truncf %17 : vector<64x512xf32> to vector<64x512xbf16>
      %c0_15 = arith.constant 0 : index
      %c0_16 = arith.constant 0 : index
      %19 = vector.load %arg6[%c0_15, %c0_16] : memref<64x512xbf16, #tpu.memory_space<vmem>>, vector<64x512xbf16>
      tpu.vector_store %arg6[%c0_15, %c0_16], %18 {strides = array<i32>} : memref<64x512xbf16, #tpu.memory_space<vmem>>, vector<64x512xbf16>,
    } else {
    }
    return
  }
  func.func @transform_0(%arg0: i32, %arg1: i32, %arg2: i32) -> (i32, i32) {
    %c0_i32 = arith.constant 0 : i32
    return %arg0, %arg2 : i32, i32
  }
  func.func @transform_1(%arg0: i32, %arg1: i32, %arg2: i32) -> (i32, i32) {
    %c0_i32 = arith.constant 0 : i32
    return %arg2, %arg1 : i32, i32
  }
  func.func @transform_2(%arg0: i32, %arg1: i32, %arg2: i32) -> (i32, i32) {
    %c0_i32 = arith.constant 0 : i32
    %c0_i32_0 = arith.constant 0 : i32
    return %arg0, %c0_i32 : i32, i32
  }
  func.func @transform_3(%arg0: i32, %arg1: i32, %arg2: i32) -> (i32, i32) {
    %c0_i32 = arith.constant 0 : i32
    return %arg0, %arg1 : i32, i32
  }
}

</mosaic_0001>

<llo_original>
// kernel: matmul_bias.1
$region0: #{matmul_bias.1}
  #allocation0 [shape = 'u32[]', space=smem, size = 0x4, offset = 0x4, fixed_abs, tag = 'smem constant byte address 0x4 - core index']
  #allocation1 [shape = 'u32[144,128]{1,0:T(1,128)}', space=vmem, size = 0x12000, scoped, tag = 'internal scratch']
  #allocation2 [shape = 'f32[64,512]{1,0:T(8,128)}', space=vmem, size = 0x20000, scoped, tag = 'scratch operand']
  %s0 = inlined_call_operand.vmem [shape: bf16[64,256], index: 0, kind: input, shape index: {}]
  %s1 = inlined_call_operand.vmem [shape: bf16[256,2048], index: 1, kind: input, shape index: {}]
  %s2 = inlined_call_operand.vmem [shape: f32[64,1], index: 2, kind: input, shape index: {}]
  %s3 = inlined_call_operand.hbm [shape: bf16[64,2048], index: 3, kind: output, shape index: {}]
  %s4 = sld [smem:[#allocation0]]
  $region76: #{matmul_bias.1} parent=0
    _
  %s6 = ssub.s32 1, %s4
  %s7 = scalar_select 0, %s6, %s4
  $region1: #{matmul_bias.1} parent=0
    #allocation3 [shape = 'u8[524288]{0}', space=vmem, size = 0x80000, scoped, tag = 'input window, operand 1']
    #allocation4 [shape = 'u8[131072]{0}', space=vmem, size = 0x20000, scoped, tag = 'output window, operand 0']
    #allocation5 [shape = 's32[2]{0}', space=sflag, size = 0x8, scoped, tag = 'scoped memory for matmul_bias.1']
    %8 = vsyncpa [#allocation5], 0
    %s9 = scalar_lea.sflag [#allocation5], 1
    %10 = vsyncpa %s9, 0
    loop: start=0, step=1, limit=6
    $region2: #{matmul_bias.1} parent=1 // loop_pre_header
      _
    $region3: #{matmul_bias.1} parent=1 // loop_header
      %s12 = sphi 0, %s16
      %p13 = scmp.ge.s32.totalorder %s12, 6
      %s19 = sphi 0, %s38
      %s20 = sphi 0, %s34
      %s21 = sphi 0, %s30
      %s22 = sphi 0, %s19
      %s23 = sphi 0, %s20
      %s24 = sphi 0, %s21
      %s25 = sphi 0, %s22
      %s26 = sphi 0, %s23
      %s27 = sphi 0, %s24
      %s43 = sphi 0, %s45
      %s46 = sphi 0, %s43
      %s47 = sphi 0, %s46
      %s63 = sphi 0, %s47
      %s71 = sphi 0, %s73
      %s74 = sphi 0, %s71
      %s75 = sphi 0, %s74
      %s91 = sphi 0, %s75
      %s97 = sphi 0, %s99
      %s100 = sphi 0, %s97
      %s101 = sphi 0, %s100
      %s117 = sphi 0, %s101
      %s125 = sphi 0, %s127
      %s128 = sphi 0, %s125
      %s129 = sphi 0, %s128
      %s145 = sphi 0, %s129
    $region4: #{matmul_bias.1} parent=1 // loop_header_branch
      %15 = sbr.rel (%p13) target = $region8
    $region5: #{matmul_bias.1} parent=1 // loop_body
      %s17 = ssub.s32 %s12, 1
      %s18 = ssub.s32 %s12, 2
      %s28 = sadd.s32 1, %s21
      %p29 = scmp.ge.s32.totalorder %s28, 1
      %s30 = scalar_select %p29, 0, %s28
      %s31 = sadd.s32 1, %s20
      %s32 = scalar_select %p29, %s31, %s20
      %p33 = scmp.ge.s32.totalorder %s32, 4
      %s34 = scalar_select %p33, 0, %s32
      %s35 = sadd.s32 1, %s19
      %s36 = scalar_select %p33, %s35, %s19
      %p37 = scmp.ge.s32.totalorder %s36, 1
      %s38 = scalar_select %p37, 0, %s36
      %s39 = ssub.s32 %s19, %s38
      %s40 = ssub.s32 %s21, %s30
      %s41 = sor.u32 %s39, %s40
      %p42 = scmp.eq.s32.totalorder %s41, 0
      %s44 = sadd.s32 %s43, 1
      %s45 = scalar_select %p42, %s43, %s44
      %p48 = pneg %p42
      %p49 = scmp.eq.s32.totalorder %s12, 3
      %p50 = por %p48, %p49
      %p51 = scmp.ne.s32.totalorder %s43, %s46
      %p52 = scmp.eq.s32.totalorder %s12, 0
      %p53 = por %p51, %p52
      %p54 = scmp.ne.s32.totalorder %s43, %s46
      %p55 = scmp.eq.s32.totalorder %s17, 3
      %p56 = por %p54, %p55
      %p57 = scmp.ne.s32.totalorder %s46, %s47
      %p58 = scmp.eq.s32.totalorder %s17, 0
      %p59 = por %p57, %p58
      %p60 = scmp.ne.s32.totalorder %s46, %s47
      %p61 = scmp.eq.s32.totalorder %s18, 3
      %p62 = por %p60, %p61
      %p64 = scmp.ne.s32.totalorder %s47, %s63
      %p65 = scmp.eq.s32.totalorder %s18, 0
      %p66 = por %p64, %p65
      %s67 = ssub.s32 %s21, %s30
      %s68 = ssub.s32 %s20, %s34
      %s69 = sor.u32 %s67, %s68
      %p70 = scmp.eq.s32.totalorder %s69, 0
      %s72 = sadd.s32 %s71, 1
      %s73 = scalar_select %p70, %s71, %s72
      %p76 = pneg %p70
      %p77 = scmp.eq.s32.totalorder %s12, 3
      %p78 = por %p76, %p77
      %p79 = scmp.ne.s32.totalorder %s71, %s74
      %p80 = scmp.eq.s32.totalorder %s12, 0
      %p81 = por %p79, %p80
      %p82 = scmp.ne.s32.totalorder %s71, %s74
      %p83 = scmp.eq.s32.totalorder %s17, 3
      %p84 = por %p82, %p83
      %p85 = scmp.ne.s32.totalorder %s74, %s75
      %p86 = scmp.eq.s32.totalorder %s17, 0
      %p87 = por %p85, %p86
      %p88 = scmp.ne.s32.totalorder %s74, %s75
      %p89 = scmp.eq.s32.totalorder %s18, 3
      %p90 = por %p88, %p89
      %p92 = scmp.ne.s32.totalorder %s75, %s91
      %p93 = scmp.eq.s32.totalorder %s18, 0
      %p94 = por %p92, %p93
      %s95 = ssub.s32 %s19, %s38
      %p96 = scmp.eq.s32.totalorder %s95, 0
      %s98 = sadd.s32 %s97, 1
      %s99 = scalar_select %p96, %s97, %s98
      %p102 = pneg %p96
      %p103 = scmp.eq.s32.totalorder %s12, 3
      %p104 = por %p102, %p103
      %p105 = scmp.ne.s32.totalorder %s97, %s100
      %p106 = scmp.eq.s32.totalorder %s12, 0
      %p107 = por %p105, %p106
      %p108 = scmp.ne.s32.totalorder %s97, %s100
      %p109 = scmp.eq.s32.totalorder %s17, 3
      %p110 = por %p108, %p109
      %p111 = scmp.ne.s32.totalorder %s100, %s101
      %p112 = scmp.eq.s32.totalorder %s17, 0
      %p113 = por %p111, %p112
      %p114 = scmp.ne.s32.totalorder %s100, %s101
      %p115 = scmp.eq.s32.totalorder %s18, 3
      %p116 = por %p114, %p115
      %p118 = scmp.ne.s32.totalorder %s101, %s117
      %p119 = scmp.eq.s32.totalorder %s18, 0
      %p120 = por %p118, %p119
      %s121 = ssub.s32 %s19, %s38
      %s122 = ssub.s32 %s20, %s34
      %s123 = sor.u32 %s121, %s122
      %p124 = scmp.eq.s32.totalorder %s123, 0
      %s126 = sadd.s32 %s125, 1
      %s127 = scalar_select %p124, %s125, %s126
      %p130 = pneg %p124
      %p131 = scmp.eq.s32.totalorder %s12, 3
      %p132 = por %p130, %p131
      %p133 = scmp.ne.s32.totalorder %s125, %s128
      %p134 = scmp.eq.s32.totalorder %s12, 0
      %p135 = por %p133, %p134
      %p136 = scmp.ne.s32.totalorder %s125, %s128
      %p137 = scmp.eq.s32.totalorder %s17, 3
      %p138 = por %p136, %p137
      %p139 = scmp.ne.s32.totalorder %s128, %s129
      %p140 = scmp.eq.s32.totalorder %s17, 0
      %p141 = por %p139, %p140
      %p142 = scmp.ne.s32.totalorder %s128, %s129
      %p143 = scmp.eq.s32.totalorder %s18, 3
      %p144 = por %p142, %p143
      %p146 = scmp.ne.s32.totalorder %s129, %s145
      %p147 = scmp.eq.s32.totalorder %s18, 0
      %p148 = por %p146, %p147
      %p149 = scmp.le.s32.totalorder 1, %s12
      %p150 = scmp.lt.s32.totalorder %s12, 5
      %p151 = pnand %p149, %p150
      %p152 = pneg %p151
      // Predicated region
      $region9: #{matmul_bias.1} parent=5 // pred_check
        _
      $region10: #{matmul_bias.1} parent=5 // pred_check_branch
        %154 = sbr.rel (%p151) target = $region12
      $region11: #{matmul_bias.1} parent=5 // pred_region
        %s155 = ssub.s32 %s12, 1
        // Predicated region
        $region13: #{matmul_bias.1} parent=11 // pred_check
          %p156 = pneg %p59
        $region14: #{matmul_bias.1} parent=11 // pred_check_branch
          %158 = sbr.rel (%p156) target = $region16
        $region15: #{matmul_bias.1} parent=11 // pred_region
          %s159 = smul.u32 8, %s22
          %s160 = smul.u32 2, %s24
          %p161 = scmp.lt.s32.totalorder %s159, 7
          %s162 = scalar_select %p161, %s159, 7
          %p163 = scmp.lt.s32.totalorder %s160, 1
          %s164 = scalar_select %p163, %s160, 1
          %s165 = smul.addr %s162, 2
          %s166 = sadd.s32 %s164, %s165
          %s167 = smul.addr %s166, 4
          %s168 = scalar_lea.vmem %s0, %s167
          %s169 = smul.u32 8, %s22
          %s170 = smul.u32 2, %s24
        $region16: #{matmul_bias.1} parent=11 // pred_fallthru
          _
        // Predicated region
        $region17: #{matmul_bias.1} parent=11 // pred_check
          %p171 = pneg %p113
        $region18: #{matmul_bias.1} parent=11 // pred_check_branch
          %173 = sbr.rel (%p171) target = $region20
        $region19: #{matmul_bias.1} parent=11 // pred_region
          %s174 = smul.u32 8, %s22
          %p175 = scmp.lt.s32.totalorder %s174, 7
          %s176 = scalar_select %p175, %s174, 7
          %s177 = smul.addr %s176, 8
          %s178 = scalar_lea.vmem %s2, %s177
          %s179 = smul.u32 8, %s22
        $region20: #{matmul_bias.1} parent=11 // pred_fallthru
          _
      $region12: #{matmul_bias.1} parent=5 // pred_fallthru
        _
      %p180 = scmp.lt.s32.totalorder %s12, 4
      // Predicated region
      $region21: #{matmul_bias.1} parent=5 // pred_check
        %p181 = pneg %p180
      $region22: #{matmul_bias.1} parent=5 // pred_check_branch
        %183 = sbr.rel (%p181) target = $region24
      $region23: #{matmul_bias.1} parent=5 // pred_region
        // Predicated region
        $region25: #{matmul_bias.1} parent=23 // pred_check
          %p184 = pneg %p81
        $region26: #{matmul_bias.1} parent=23 // pred_check_branch
          %186 = sbr.rel (%p184) target = $region28
        $region27: #{matmul_bias.1} parent=23 // pred_region
          %s187 = sand.u32 %s71, 1
          %s188 = sand.u32 %s71, 1
          %s189 = smul.addr %s188, 512
          %s190 = scalar_lea.vmem [#allocation3], %s189
          %s191 = smul.u32 32, %s21
          %s192 = smul.u32 4, %s20
          %s193 = smul.addr %s191, 16
          %s194 = sadd.s32 %s192, %s193
          %s195 = smul.addr %s194, 4
          %s196 = scalar_lea.vmem %s1, %s195
          // Predicated region
          $region29: #{matmul_bias.1} parent=27 // pred_check
            _
          $region30: #{matmul_bias.1} parent=27 // pred_check_branch
            %198 = sbr.rel (0) target = $region32
          $region31: #{matmul_bias.1} parent=27 // pred_region
            // Predicated region
            $region33: #{matmul_bias.1} parent=31 // pred_check
              _
            $region34: #{matmul_bias.1} parent=31 // pred_check_branch
              %200 = sbr.rel (0) target = $region36
            $region35: #{matmul_bias.1} parent=31 // pred_region
              loop: start=0, step=1, limit=1
              $region37: #{matmul_bias.1} parent=35 // loop_pre_header
                _
              $region38: #{matmul_bias.1} parent=35 // loop_header
                %s202 = sphi 0, %s206
                %p203 = scmp.ge.s32.totalorder %s202, 1
                %s207 = sphi %s196, %s196
                %s208 = sphi %s190, %s190
              $region39: #{matmul_bias.1} parent=35 // loop_header_branch
                %205 = sbr.rel (%p203) target = $region43
              $region40: #{matmul_bias.1} parent=35 // loop_body
                %v209 = vld [vmem:[%s207] sm:$0xff]
                %210 = vst [vmem:[%s208] sm:$0xff] %v209
                %v211 = vld [vmem:[%s207 + $0x8] sm:$0xff]
                %212 = vst [vmem:[%s208 + $0x8] sm:$0xff] %v211
                %v213 = vld [vmem:[%s207 + $0x40] sm:$0xff]
                %214 = vst [vmem:[%s208 + $0x10] sm:$0xff] %v213
                %v215 = vld [vmem:[%s207 + $0x48] sm:$0xff]
                %216 = vst [vmem:[%s208 + $0x18] sm:$0xff] %v215
                %v217 = vld [vmem:[%s207 + $0x80] sm:$0xff]
                %218 = vst [vmem:[%s208 + $0x20] sm:$0xff] %v217
                %v219 = vld [vmem:[%s207 + $0x88] sm:$0xff]
                %220 = vst [vmem:[%s208 + $0x28] sm:$0xff] %v219
                %v221 = vld [vmem:[%s207 + $0xc0] sm:$0xff]
                %222 = vst [vmem:[%s208 + $0x30] sm:$0xff] %v221
                %v223 = vld [vmem:[%s207 + $0xc8] sm:$0xff]
                %224 = vst [vmem:[%s208 + $0x38] sm:$0xff] %v223
                %v225 = vld [vmem:[%s207 + $0x100] sm:$0xff]
                %226 = vst [vmem:[%s208 + $0x40] sm:$0xff] %v225
                %v227 = vld [vmem:[%s207 + $0x108] sm:$0xff]
                %228 = vst [vmem:[%s208 + $0x48] sm:$0xff] %v227
                %v229 = vld [vmem:[%s207 + $0x140] sm:$0xff]
                %230 = vst [vmem:[%s208 + $0x50] sm:$0xff] %v229
                %v231 = vld [vmem:[%s207 + $0x148] sm:$0xff]
                %232 = vst [vmem:[%s208 + $0x58] sm:$0xff] %v231
                %v233 = vld [vmem:[%s207 + $0x180] sm:$0xff]
                %234 = vst [vmem:[%s208 + $0x60] sm:$0xff] %v233
                %v235 = vld [vmem:[%s207 + $0x188] sm:$0xff]
                %236 = vst [vmem:[%s208 + $0x68] sm:$0xff] %v235
                %v237 = vld [vmem:[%s207 + $0x1c0] sm:$0xff]
                %238 = vst [vmem:[%s208 + $0x70] sm:$0xff] %v237
                %v239 = vld [vmem:[%s207 + $0x1c8] sm:$0xff]
                %240 = vst [vmem:[%s208 + $0x78] sm:$0xff] %v239
                %v241 = vld [vmem:[%s207 + $0x200] sm:$0xff]
                %242 = vst [vmem:[%s208 + $0x80] sm:$0xff] %v241
                %v243 = vld [vmem:[%s207 + $0x208] sm:$0xff]
                %244 = vst [vmem:[%s208 + $0x88] sm:$0xff] %v243
                %v245 = vld [vmem:[%s207 + $0x240] sm:$0xff]
                %246 = vst [vmem:[%s208 + $0x90] sm:$0xff] %v245
                %v247 = vld [vmem:[%s207 + $0x248] sm:$0xff]
                %248 = vst [vmem:[%s208 + $0x98] sm:$0xff] %v247
                %v249 = vld [vmem:[%s207 + $0x280] sm:$0xff]
                %250 = vst [vmem:[%s208 + $0xa0] sm:$0xff] %v249
                %v251 = vld [vmem:[%s207 + $0x288] sm:$0xff]
                %252 = vst [vmem:[%s208 + $0xa8] sm:$0xff] %v251
                %v253 = vld [vmem:[%s207 + $0x2c0] sm:$0xff]
                %254 = vst [vmem:[%s208 + $0xb0] sm:$0xff] %v253
                %v255 = vld [vmem:[%s207 + $0x2c8] sm:$0xff]
                %256 = vst [vmem:[%s208 + $0xb8] sm:$0xff] %v255
                %v257 = vld [vmem:[%s207 + $0x300] sm:$0xff]
                %258 = vst [vmem:[%s208 + $0xc0] sm:$0xff] %v257
                %v259 = vld [vmem:[%s207 + $0x308] sm:$0xff]
                %260 = vst [vmem:[%s208 + $0xc8] sm:$0xff] %v259
                %v261 = vld [vmem:[%s207 + $0x340] sm:$0xff]
                %262 = vst [vmem:[%s208 + $0xd0] sm:$0xff] %v261
                %v263 = vld [vmem:[%s207 + $0x348] sm:$0xff]
                %264 = vst [vmem:[%s208 + $0xd8] sm:$0xff] %v263
                %v265 = vld [vmem:[%s207 + $0x380] sm:$0xff]
                %266 = vst [vmem:[%s208 + $0xe0] sm:$0xff] %v265
                %v267 = vld [vmem:[%s207 + $0x388] sm:$0xff]
                %268 = vst [vmem:[%s208 + $0xe8] sm:$0xff] %v267
                %v269 = vld [vmem:[%s207 + $0x3c0] sm:$0xff]
                %270 = vst [vmem:[%s208 + $0xf0] sm:$0xff] %v269
                %v271 = vld [vmem:[%s207 + $0x3c8] sm:$0xff]
                %272 = vst [vmem:[%s208 + $0xf8] sm:$0xff] %v271
                %v273 = vld [vmem:[%s207 + $0x400] sm:$0xff]
                %274 = vst [vmem:[%s208 + $0x100] sm:$0xff] %v273
                %v275 = vld [vmem:[%s207 + $0x408] sm:$0xff]
                %276 = vst [vmem:[%s208 + $0x108] sm:$0xff] %v275
                %v277 = vld [vmem:[%s207 + $0x440] sm:$0xff]
                %278 = vst [vmem:[%s208 + $0x110] sm:$0xff] %v277
                %v279 = vld [vmem:[%s207 + $0x448] sm:$0xff]
                %280 = vst [vmem:[%s208 + $0x118] sm:$0xff] %v279
                %v281 = vld [vmem:[%s207 + $0x480] sm:$0xff]
                %282 = vst [vmem:[%s208 + $0x120] sm:$0xff] %v281
                %v283 = vld [vmem:[%s207 + $0x488] sm:$0xff]
                %284 = vst [vmem:[%s208 + $0x128] sm:$0xff] %v283
                %v285 = vld [vmem:[%s207 + $0x4c0] sm:$0xff]
                %286 = vst [vmem:[%s208 + $0x130] sm:$0xff] %v285
                %v287 = vld [vmem:[%s207 + $0x4c8] sm:$0xff]
                %288 = vst [vmem:[%s208 + $0x138] sm:$0xff] %v287
                %v289 = vld [vmem:[%s207 + $0x500] sm:$0xff]
                %290 = vst [vmem:[%s208 + $0x140] sm:$0xff] %v289
                %v291 = vld [vmem:[%s207 + $0x508] sm:$0xff]
                %292 = vst [vmem:[%s208 + $0x148] sm:$0xff] %v291
                %v293 = vld [vmem:[%s207 + $0x540] sm:$0xff]
                %294 = vst [vmem:[%s208 + $0x150] sm:$0xff] %v293
                %v295 = vld [vmem:[%s207 + $0x548] sm:$0xff]
                %296 = vst [vmem:[%s208 + $0x158] sm:$0xff] %v295
                %v297 = vld [vmem:[%s207 + $0x580] sm:$0xff]
                %298 = vst [vmem:[%s208 + $0x160] sm:$0xff] %v297
                %v299 = vld [vmem:[%s207 + $0x588] sm:$0xff]
                %300 = vst [vmem:[%s208 + $0x168] sm:$0xff] %v299
                %v301 = vld [vmem:[%s207 + $0x5c0] sm:$0xff]
                %302 = vst [vmem:[%s208 + $0x170] sm:$0xff] %v301
                %v303 = vld [vmem:[%s207 + $0x5c8] sm:$0xff]
                %304 = vst [vmem:[%s208 + $0x178] sm:$0xff] %v303
                %v305 = vld [vmem:[%s207 + $0x600] sm:$0xff]
                %306 = vst [vmem:[%s208 + $0x180] sm:$0xff] %v305
                %v307 = vld [vmem:[%s207 + $0x608] sm:$0xff]
                %308 = vst [vmem:[%s208 + $0x188] sm:$0xff] %v307
                %v309 = vld [vmem:[%s207 + $0x640] sm:$0xff]
                %310 = vst [vmem:[%s208 + $0x190] sm:$0xff] %v309
                %v311 = vld [vmem:[%s207 + $0x648] sm:$0xff]
                %312 = vst [vmem:[%s208 + $0x198] sm:$0xff] %v311
                %v313 = vld [vmem:[%s207 + $0x680] sm:$0xff]
                %314 = vst [vmem:[%s208 + $0x1a0] sm:$0xff] %v313
                %v315 = vld [vmem:[%s207 + $0x688] sm:$0xff]
                %316 = vst [vmem:[%s208 + $0x1a8] sm:$0xff] %v315
                %v317 = vld [vmem:[%s207 + $0x6c0] sm:$0xff]
                %318 = vst [vmem:[%s208 + $0x1b0] sm:$0xff] %v317
                %v319 = vld [vmem:[%s207 + $0x6c8] sm:$0xff]
                %320 = vst [vmem:[%s208 + $0x1b8] sm:$0xff] %v319
                %v321 = vld [vmem:[%s207 + $0x700] sm:$0xff]
                %322 = vst [vmem:[%s208 + $0x1c0] sm:$0xff] %v321
                %v323 = vld [vmem:[%s207 + $0x708] sm:$0xff]
                %324 = vst [vmem:[%s208 + $0x1c8] sm:$0xff] %v323
                %v325 = vld [vmem:[%s207 + $0x740] sm:$0xff]
                %326 = vst [vmem:[%s208 + $0x1d0] sm:$0xff] %v325
                %v327 = vld [vmem:[%s207 + $0x748] sm:$0xff]
                %328 = vst [vmem:[%s208 + $0x1d8] sm:$0xff] %v327
                %v329 = vld [vmem:[%s207 + $0x780] sm:$0xff]
                %330 = vst [vmem:[%s208 + $0x1e0] sm:$0xff] %v329
                %v331 = vld [vmem:[%s207 + $0x788] sm:$0xff]
                %332 = vst [vmem:[%s208 + $0x1e8] sm:$0xff] %v331
                %v333 = vld [vmem:[%s207 + $0x7c0] sm:$0xff]
                %334 = vst [vmem:[%s208 + $0x1f0] sm:$0xff] %v333
                %v335 = vld [vmem:[%s207 + $0x7c8] sm:$0xff]
                %336 = vst [vmem:[%s208 + $0x1f8] sm:$0xff] %v335
              $region41: #{matmul_bias.1} parent=35 // loop_footer
                %s206 = sadd.s32 1, %s202
              $region42: #{matmul_bias.1} parent=35 // loop_footer_branch
                %201 = sbr.rel target = $region38
              $region43: #{matmul_bias.1} parent=35 // loop_exit
                _
            $region36: #{matmul_bias.1} parent=31 // pred_fallthru
              _
            // Predicated region
            $region44: #{matmul_bias.1} parent=31 // pred_check
              _
            $region45: #{matmul_bias.1} parent=31 // pred_check_branch
              %338 = sbr.rel target = $region47
            $region46: #{matmul_bias.1} parent=31 // pred_region
              _
            $region47: #{matmul_bias.1} parent=31 // pred_fallthru
              _
          $region32: #{matmul_bias.1} parent=27 // pred_fallthru
            _
          %339 = vnop
        $region28: #{matmul_bias.1} parent=23 // pred_fallthru
          _
      $region24: #{matmul_bias.1} parent=5 // pred_fallthru
        _
      %p340 = scmp.le.s32.totalorder 1, %s12
      %p341 = scmp.lt.s32.totalorder %s12, 5
      %p342 = pnand %p340, %p341
      %p343 = pneg %p342
      // Predicated region
      $region48: #{matmul_bias.1} parent=5 // pred_check
        _
      $region49: #{matmul_bias.1} parent=5 // pred_check_branch
        %345 = sbr.rel (%p342) target = $region51
      $region50: #{matmul_bias.1} parent=5 // pred_region
        %s346 = ssub.s32 %s12, 1
        %s347 = sand.u32 %s74, 1
        %s348 = sand.u32 %s74, 1
        %s349 = smul.addr %s348, 512
        %s350 = scalar_lea.vmem [#allocation3], %s349
        // Predicated region
        $region52: #{matmul_bias.1} parent=50 // pred_check
          %p351 = pneg %p87
        $region53: #{matmul_bias.1} parent=50 // pred_check_branch
          %353 = sbr.rel (%p351) target = $region55
        $region54: #{matmul_bias.1} parent=50 // pred_region
          _
        $region55: #{matmul_bias.1} parent=50 // pred_fallthru
          _
        %s354 = smul.u32 8, %s22
        %s355 = smul.u32 2, %s24
        %p356 = scmp.lt.s32.totalorder %s354, 7
        %s357 = scalar_select %p356, %s354, 7
        %p358 = scmp.lt.s32.totalorder %s355, 1
        %s359 = scalar_select %p358, %s355, 1
        %s360 = smul.addr %s357, 2
        %s361 = sadd.s32 %s359, %s360
        %s362 = smul.addr %s361, 4
        %s363 = scalar_lea.vmem %s0, %s362
        %p364 = pneg %p59
        %p365 = pneg %p56
        %s366 = sand.u32 %s74, 1
        %s367 = sand.u32 %s74, 1
        %s368 = smul.addr %s367, 512
        %s369 = scalar_lea.vmem [#allocation3], %s368
        %p370 = pneg %p87
        %p371 = pneg %p84
        %s372 = smul.u32 8, %s22
        %p373 = scmp.lt.s32.totalorder %s372, 7
        %s374 = scalar_select %p373, %s372, 7
        %s375 = smul.addr %s374, 8
        %s376 = scalar_lea.vmem %s2, %s375
        %p377 = pneg %p113
        %p378 = pneg %p110
        %p379 = pneg %p141
        %p380 = pneg %p138
        %s381 = sand.u32 %s128, 1
        %s382 = scalar_lea.sflag [#allocation5], %s381
        %s383 = sand.u32 %s128, 1
        %s384 = smul.addr %s383, 128
        %s385 = scalar_lea.vmem [#allocation4], %s384
        %s386 = smul.u32 8, %s22
        %s387 = smul.u32 2, %s24
        %p388 = scmp.lt.s32.totalorder %s386, 7
        %s389 = scalar_select %p388, %s386, 7
        %p390 = scmp.lt.s32.totalorder %s387, 1
        %s391 = scalar_select %p390, %s387, 1
        %s392 = smul.addr %s389, 2
        %s393 = sadd.s32 %s391, %s392
        %s394 = smul.addr %s393, 4
        %s395 = scalar_lea.vmem %s0, %s394
        %s396 = smul.u32 8, %s22
        %s397 = smul.u32 2, %s24
        %s398 = smul.u32 32, %s24
        %s399 = smul.u32 4, %s23
        %s400 = smul.u32 8, %s22
        %p401 = scmp.lt.s32.totalorder %s400, 7
        %s402 = scalar_select %p401, %s400, 7
        %s403 = smul.addr %s402, 8
        %s404 = scalar_lea.vmem %s2, %s403
        %s405 = smul.u32 8, %s22
        %s406 = smul.u32 8, %s22
        %s407 = smul.u32 4, %s23
        %p408 = scmp.eq.s32.totalorder %s24, 0
        // Predicated region
        $region56: #{matmul_bias.1} parent=50 // pred_check
          %p409 = pneg %p408
        $region57: #{matmul_bias.1} parent=50 // pred_check_branch
          %411 = sbr.rel (%p409) target = $region59
        $region58: #{matmul_bias.1} parent=50 // pred_region
          %412 = vst [vmem:[#allocation2] sm:$0xff] 0.0
          %413 = vst [vmem:[#allocation2 + $0x8] sm:$0xff] 0.0
          %414 = vst [vmem:[#allocation2 + $0x10] sm:$0xff] 0.0
          %415 = vst [vmem:[#allocation2 + $0x18] sm:$0xff] 0.0
          %416 = vst [vmem:[#allocation2 + $0x20] sm:$0xff] 0.0
          %417 = vst [vmem:[#allocation2 + $0x28] sm:$0xff] 0.0
          %418 = vst [vmem:[#allocation2 + $0x30] sm:$0xff] 0.0
          %419 = vst [vmem:[#allocation2 + $0x38] sm:$0xff] 0.0
          %420 = vst [vmem:[#allocation2 + $0x40] sm:$0xff] 0.0
          %421 = vst [vmem:[#allocation2 + $0x48] sm:$0xff] 0.0
          %422 = vst [vmem:[#allocation2 + $0x50] sm:$0xff] 0.0
          %423 = vst [vmem:[#allocation2 + $0x58] sm:$0xff] 0.0
          %424 = vst [vmem:[#allocation2 + $0x60] sm:$0xff] 0.0
          %425 = vst [vmem:[#allocation2 + $0x68] sm:$0xff] 0.0
          %426 = vst [vmem:[#allocation2 + $0x70] sm:$0xff] 0.0
          %427 = vst [vmem:[#allocation2 + $0x78] sm:$0xff] 0.0
          %428 = vst [vmem:[#allocation2 + $0x80] sm:$0xff] 0.0
          %429 = vst [vmem:[#allocation2 + $0x88] sm:$0xff] 0.0
          %430 = vst [vmem:[#allocation2 + $0x90] sm:$0xff] 0.0
          %431 = vst [vmem:[#allocation2 + $0x98] sm:$0xff] 0.0
          %432 = vst [vmem:[#allocation2 + $0xa0] sm:$0xff] 0.0
          %433 = vst [vmem:[#allocation2 + $0xa8] sm:$0xff] 0.0
          %434 = vst [vmem:[#allocation2 + $0xb0] sm:$0xff] 0.0
          %435 = vst [vmem:[#allocation2 + $0xb8] sm:$0xff] 0.0
          %436 = vst [vmem:[#allocation2 + $0xc0] sm:$0xff] 0.0
          %437 = vst [vmem:[#allocation2 + $0xc8] sm:$0xff] 0.0
          %438 = vst [vmem:[#allocation2 + $0xd0] sm:$0xff] 0.0
          %439 = vst [vmem:[#allocation2 + $0xd8] sm:$0xff] 0.0
          %440 = vst [vmem:[#allocation2 + $0xe0] sm:$0xff] 0.0
          %441 = vst [vmem:[#allocation2 + $0xe8] sm:$0xff] 0.0
          %442 = vst [vmem:[#allocation2 + $0xf0] sm:$0xff] 0.0
          %443 = vst [vmem:[#allocation2 + $0xf8] sm:$0xff] 0.0
        $region59: #{matmul_bias.1} parent=50 // pred_fallthru
          _
        %v444 = vld [vmem:[#allocation2] sm:$0xff]
        %v445 = vld [vmem:[#allocation2 + $0x8] sm:$0xff]
        %v446 = vld [vmem:[#allocation2 + $0x10] sm:$0xff]
        %v447 = vld [vmem:[#allocation2 + $0x18] sm:$0xff]
        %v448 = vld [vmem:[#allocation2 + $0x20] sm:$0xff]
        %v449 = vld [vmem:[#allocation2 + $0x28] sm:$0xff]
        %v450 = vld [vmem:[#allocation2 + $0x30] sm:$0xff]
        %v451 = vld [vmem:[#allocation2 + $0x38] sm:$0xff]
        %v452 = vld [vmem:[#allocation2 + $0x40] sm:$0xff]
        %v453 = vld [vmem:[#allocation2 + $0x48] sm:$0xff]
        %v454 = vld [vmem:[#allocation2 + $0x50] sm:$0xff]
        %v455 = vld [vmem:[#allocation2 + $0x58] sm:$0xff]
        %v456 = vld [vmem:[#allocation2 + $0x60] sm:$0xff]
        %v457 = vld [vmem:[#allocation2 + $0x68] sm:$0xff]
        %v458 = vld [vmem:[#allocation2 + $0x70] sm:$0xff]
        %v459 = vld [vmem:[#allocation2 + $0x78] sm:$0xff]
        %v460 = vld [vmem:[#allocation2 + $0x80] sm:$0xff]
        %v461 = vld [vmem:[#allocation2 + $0x88] sm:$0xff]
        %v462 = vld [vmem:[#allocation2 + $0x90] sm:$0xff]
        %v463 = vld [vmem:[#allocation2 + $0x98] sm:$0xff]
        %v464 = vld [vmem:[#allocation2 + $0xa0] sm:$0xff]
        %v465 = vld [vmem:[#allocation2 + $0xa8] sm:$0xff]
        %v466 = vld [vmem:[#allocation2 + $0xb0] sm:$0xff]
        %v467 = vld [vmem:[#allocation2 + $0xb8] sm:$0xff]
        %v468 = vld [vmem:[#allocation2 + $0xc0] sm:$0xff]
        %v469 = vld [vmem:[#allocation2 + $0xc8] sm:$0xff]
        %v470 = vld [vmem:[#allocation2 + $0xd0] sm:$0xff]
        %v471 = vld [vmem:[#allocation2 + $0xd8] sm:$0xff]
        %v472 = vld [vmem:[#allocation2 + $0xe0] sm:$0xff]
        %v473 = vld [vmem:[#allocation2 + $0xe8] sm:$0xff]
        %v474 = vld [vmem:[#allocation2 + $0xf0] sm:$0xff]
        %v475 = vld [vmem:[#allocation2 + $0xf8] sm:$0xff]
        %v476 = vld [vmem:[%s395] sm:$0xff]
        %v477 = vld [vmem:[%s395 + $0x8] sm:$0xff]
        %v478 = vld [vmem:[%s395 + $0x10] sm:$0xff]
        %v479 = vld [vmem:[%s395 + $0x18] sm:$0xff]
        %v480 = vld [vmem:[%s395 + $0x20] sm:$0xff]
        %v481 = vld [vmem:[%s395 + $0x28] sm:$0xff]
        %v482 = vld [vmem:[%s395 + $0x30] sm:$0xff]
        %v483 = vld [vmem:[%s395 + $0x38] sm:$0xff]
        %v484 = vld [vmem:[%s350] sm:$0xff]
        %v485 = vld [vmem:[%s350 + $0x8] sm:$0xff]
        %v486 = vld [vmem:[%s350 + $0x10] sm:$0xff]
        %v487 = vld [vmem:[%s350 + $0x18] sm:$0xff]
        %v488 = vld [vmem:[%s350 + $0x20] sm:$0xff]
        %v489 = vld [vmem:[%s350 + $0x28] sm:$0xff]
        %v490 = vld [vmem:[%s350 + $0x30] sm:$0xff]
        %v491 = vld [vmem:[%s350 + $0x38] sm:$0xff]
        %v492 = vld [vmem:[%s350 + $0x40] sm:$0xff]
        %v493 = vld [vmem:[%s350 + $0x48] sm:$0xff]
        %v494 = vld [vmem:[%s350 + $0x50] sm:$0xff]
        %v495 = vld [vmem:[%s350 + $0x58] sm:$0xff]
        %v496 = vld [vmem:[%s350 + $0x60] sm:$0xff]
        %v497 = vld [vmem:[%s350 + $0x68] sm:$0xff]
        %v498 = vld [vmem:[%s350 + $0x70] sm:$0xff]
        %v499 = vld [vmem:[%s350 + $0x78] sm:$0xff]
        %v500 = vld [vmem:[%s350 + $0x80] sm:$0xff]
        %v501 = vld [vmem:[%s350 + $0x88] sm:$0xff]
        %v502 = vld [vmem:[%s350 + $0x90] sm:$0xff]
        %v503 = vld [vmem:[%s350 + $0x98] sm:$0xff]
        %v504 = vld [vmem:[%s350 + $0xa0] sm:$0xff]
        %v505 = vld [vmem:[%s350 + $0xa8] sm:$0xff]
        %v506 = vld [vmem:[%s350 + $0xb0] sm:$0xff]
        %v507 = vld [vmem:[%s350 + $0xb8] sm:$0xff]
        %v508 = vld [vmem:[%s350 + $0xc0] sm:$0xff]
        %v509 = vld [vmem:[%s350 + $0xc8] sm:$0xff]
        %v510 = vld [vmem:[%s350 + $0xd0] sm:$0xff]
        %v511 = vld [vmem:[%s350 + $0xd8] sm:$0xff]
        %v512 = vld [vmem:[%s350 + $0xe0] sm:$0xff]
        %v513 = vld [vmem:[%s350 + $0xe8] sm:$0xff]
        %v514 = vld [vmem:[%s350 + $0xf0] sm:$0xff]
        %v515 = vld [vmem:[%s350 + $0xf8] sm:$0xff]
        %v516 = vld [vmem:[%s350 + $0x100] sm:$0xff]
        %v517 = vld [vmem:[%s350 + $0x108] sm:$0xff]
        %v518 = vld [vmem:[%s350 + $0x110] sm:$0xff]
        %v519 = vld [vmem:[%s350 + $0x118] sm:$0xff]
        %v520 = vld [vmem:[%s350 + $0x120] sm:$0xff]
        %v521 = vld [vmem:[%s350 + $0x128] sm:$0xff]
        %v522 = vld [vmem:[%s350 + $0x130] sm:$0xff]
        %v523 = vld [vmem:[%s350 + $0x138] sm:$0xff]
        %v524 = vld [vmem:[%s350 + $0x140] sm:$0xff]
        %v525 = vld [vmem:[%s350 + $0x148] sm:$0xff]
        %v526 = vld [vmem:[%s350 + $0x150] sm:$0xff]
        %v527 = vld [vmem:[%s350 + $0x158] sm:$0xff]
        %v528 = vld [vmem:[%s350 + $0x160] sm:$0xff]
        %v529 = vld [vmem:[%s350 + $0x168] sm:$0xff]
        %v530 = vld [vmem:[%s350 + $0x170] sm:$0xff]
        %v531 = vld [vmem:[%s350 + $0x178] sm:$0xff]
        %v532 = vld [vmem:[%s350 + $0x180] sm:$0xff]
        %v533 = vld [vmem:[%s350 + $0x188] sm:$0xff]
        %v534 = vld [vmem:[%s350 + $0x190] sm:$0xff]
        %v535 = vld [vmem:[%s350 + $0x198] sm:$0xff]
        %v536 = vld [vmem:[%s350 + $0x1a0] sm:$0xff]
        %v537 = vld [vmem:[%s350 + $0x1a8] sm:$0xff]
        %v538 = vld [vmem:[%s350 + $0x1b0] sm:$0xff]
        %v539 = vld [vmem:[%s350 + $0x1b8] sm:$0xff]
        %v540 = vld [vmem:[%s350 + $0x1c0] sm:$0xff]
        %v541 = vld [vmem:[%s350 + $0x1c8] sm:$0xff]
        %v542 = vld [vmem:[%s350 + $0x1d0] sm:$0xff]
        %v543 = vld [vmem:[%s350 + $0x1d8] sm:$0xff]
        %v544 = vld [vmem:[%s350 + $0x1e0] sm:$0xff]
        %v545 = vld [vmem:[%s350 + $0x1e8] sm:$0xff]
        %v546 = vld [vmem:[%s350 + $0x1f0] sm:$0xff]
        %v547 = vld [vmem:[%s350 + $0x1f8] sm:$0xff]
        %v556 = vunpack.c.l.b16 %v476
        %v557 = vunpack.c.h.b16 %v476
        %v558 = vunpack.c.l.b16 %v477
        %v559 = vunpack.c.h.b16 %v477
        %v560 = vunpack.c.l.b16 %v478
        %v561 = vunpack.c.h.b16 %v478
        %v562 = vunpack.c.l.b16 %v479
        %v563 = vunpack.c.h.b16 %v479
        %v564 = vunpack.c.l.b16 %v480
        %v565 = vunpack.c.h.b16 %v480
        %v566 = vunpack.c.l.b16 %v481
        %v567 = vunpack.c.h.b16 %v481
        %v568 = vunpack.c.l.b16 %v482
        %v569 = vunpack.c.h.b16 %v482
        %v570 = vunpack.c.l.b16 %v483
        %v571 = vunpack.c.h.b16 %v483
        %v572 = vpack.c.b16 %v558, %v556
        %v573 = vpack.c.b16 %v559, %v557
        %v574 = vpack.c.b16 %v562, %v560
        %v575 = vpack.c.b16 %v563, %v561
        %v576 = vpack.c.b16 %v566, %v564
        %v577 = vpack.c.b16 %v567, %v565
        %v578 = vpack.c.b16 %v570, %v568
        %v579 = vpack.c.b16 %v571, %v569
        %v652 = vunpack.c.l.b16 %v484
        %v653 = vunpack.c.h.b16 %v484
        %v654 = vunpack.c.l.b16 %v485
        %v655 = vunpack.c.h.b16 %v485
        %v656 = vunpack.c.l.b16 %v486
        %v657 = vunpack.c.h.b16 %v486
        %v658 = vunpack.c.l.b16 %v487
        %v659 = vunpack.c.h.b16 %v487
        %v660 = vunpack.c.l.b16 %v488
        %v661 = vunpack.c.h.b16 %v488
        %v662 = vunpack.c.l.b16 %v489
        %v663 = vunpack.c.h.b16 %v489
        %v664 = vunpack.c.l.b16 %v490
        %v665 = vunpack.c.h.b16 %v490
        %v666 = vunpack.c.l.b16 %v491
        %v667 = vunpack.c.h.b16 %v491
        %v668 = vunpack.c.l.b16 %v492
        %v669 = vunpack.c.h.b16 %v492
        %v670 = vunpack.c.l.b16 %v493
        %v671 = vunpack.c.h.b16 %v493
        %v672 = vunpack.c.l.b16 %v494
        %v673 = vunpack.c.h.b16 %v494
        %v674 = vunpack.c.l.b16 %v495
        %v675 = vunpack.c.h.b16 %v495
        %v676 = vunpack.c.l.b16 %v496
        %v677 = vunpack.c.h.b16 %v496
        %v678 = vunpack.c.l.b16 %v497
        %v679 = vunpack.c.h.b16 %v497
        %v680 = vunpack.c.l.b16 %v498
        %v681 = vunpack.c.h.b16 %v498
        %v682 = vunpack.c.l.b16 %v499
        %v683 = vunpack.c.h.b16 %v499
        %v684 = vunpack.c.l.b16 %v500
        %v685 = vunpack.c.h.b16 %v500
        %v686 = vunpack.c.l.b16 %v501
        %v687 = vunpack.c.h.b16 %v501
        %v688 = vunpack.c.l.b16 %v502
        %v689 = vunpack.c.h.b16 %v502
        %v690 = vunpack.c.l.b16 %v503
        %v691 = vunpack.c.h.b16 %v503
        %v692 = vunpack.c.l.b16 %v504
        %v693 = vunpack.c.h.b16 %v504
        %v694 = vunpack.c.l.b16 %v505
        %v695 = vunpack.c.h.b16 %v505
        %v696 = vunpack.c.l.b16 %v506
        %v697 = vunpack.c.h.b16 %v506
        %v698 = vunpack.c.l.b16 %v507
        %v699 = vunpack.c.h.b16 %v507
        %v700 = vunpack.c.l.b16 %v508
        %v701 = vunpack.c.h.b16 %v508
        %v702 = vunpack.c.l.b16 %v509
        %v703 = vunpack.c.h.b16 %v509
        %v704 = vunpack.c.l.b16 %v510
        %v705 = vunpack.c.h.b16 %v510
        %v706 = vunpack.c.l.b16 %v511
        %v707 = vunpack.c.h.b16 %v511
        %v708 = vunpack.c.l.b16 %v512
        %v709 = vunpack.c.h.b16 %v512
        %v710 = vunpack.c.l.b16 %v513
        %v711 = vunpack.c.h.b16 %v513
        %v712 = vunpack.c.l.b16 %v514
        %v713 = vunpack.c.h.b16 %v514
        %v714 = vunpack.c.l.b16 %v515
        %v715 = vunpack.c.h.b16 %v515
        %v716 = vunpack.c.l.b16 %v516
        %v717 = vunpack.c.h.b16 %v516
        %v718 = vunpack.c.l.b16 %v517
        %v719 = vunpack.c.h.b16 %v517
        %v720 = vunpack.c.l.b16 %v518
        %v721 = vunpack.c.h.b16 %v518
        %v722 = vunpack.c.l.b16 %v519
        %v723 = vunpack.c.h.b16 %v519
        %v724 = vunpack.c.l.b16 %v520
        %v725 = vunpack.c.h.b16 %v520
        %v726 = vunpack.c.l.b16 %v521
        %v727 = vunpack.c.h.b16 %v521
        %v728 = vunpack.c.l.b16 %v522
        %v729 = vunpack.c.h.b16 %v522
        %v730 = vunpack.c.l.b16 %v523
        %v731 = vunpack.c.h.b16 %v523
        %v732 = vunpack.c.l.b16 %v524
        %v733 = vunpack.c.h.b16 %v524
        %v734 = vunpack.c.l.b16 %v525
        %v735 = vunpack.c.h.b16 %v525
        %v736 = vunpack.c.l.b16 %v526
        %v737 = vunpack.c.h.b16 %v526
        %v738 = vunpack.c.l.b16 %v527
        %v739 = vunpack.c.h.b16 %v527
        %v740 = vunpack.c.l.b16 %v528
        %v741 = vunpack.c.h.b16 %v528
        %v742 = vunpack.c.l.b16 %v529
        %v743 = vunpack.c.h.b16 %v529
        %v744 = vunpack.c.l.b16 %v530
        %v745 = vunpack.c.h.b16 %v530
        %v746 = vunpack.c.l.b16 %v531
        %v747 = vunpack.c.h.b16 %v531
        %v748 = vunpack.c.l.b16 %v532
        %v749 = vunpack.c.h.b16 %v532
        %v750 = vunpack.c.l.b16 %v533
        %v751 = vunpack.c.h.b16 %v533
        %v752 = vunpack.c.l.b16 %v534
        %v753 = vunpack.c.h.b16 %v534
        %v754 = vunpack.c.l.b16 %v535
        %v755 = vunpack.c.h.b16 %v535
        %v756 = vunpack.c.l.b16 %v536
        %v757 = vunpack.c.h.b16 %v536
        %v758 = vunpack.c.l.b16 %v537
        %v759 = vunpack.c.h.b16 %v537
        %v760 = vunpack.c.l.b16 %v538
        %v761 = vunpack.c.h.b16 %v538
        %v762 = vunpack.c.l.b16 %v539
        %v763 = vunpack.c.h.b16 %v539
        %v764 = vunpack.c.l.b16 %v540
        %v765 = vunpack.c.h.b16 %v540
        %v766 = vunpack.c.l.b16 %v541
        %v767 = vunpack.c.h.b16 %v541
        %v768 = vunpack.c.l.b16 %v542
        %v769 = vunpack.c.h.b16 %v542
        %v770 = vunpack.c.l.b16 %v543
        %v771 = vunpack.c.h.b16 %v543
        %v772 = vunpack.c.l.b16 %v544
        %v773 = vunpack.c.h.b16 %v544
        %v774 = vunpack.c.l.b16 %v545
        %v775 = vunpack.c.h.b16 %v545
        %v776 = vunpack.c.l.b16 %v546
        %v777 = vunpack.c.h.b16 %v546
        %v778 = vunpack.c.l.b16 %v547
        %v779 = vunpack.c.h.b16 %v547
        %v780 = vpack.c.b16 %v656, %v652
        %v781 = vpack.c.b16 %v657, %v653
        %v782 = vpack.c.b16 %v658, %v654
        %v783 = vpack.c.b16 %v659, %v655
        %v784 = vpack.c.b16 %v664, %v660
        %v785 = vpack.c.b16 %v665, %v661
        %v786 = vpack.c.b16 %v666, %v662
        %v787 = vpack.c.b16 %v667, %v663
        %v788 = vpack.c.b16 %v672, %v668
        %v789 = vpack.c.b16 %v673, %v669
        %v790 = vpack.c.b16 %v674, %v670
        %v791 = vpack.c.b16 %v675, %v671
        %v792 = vpack.c.b16 %v680, %v676
        %v793 = vpack.c.b16 %v681, %v677
        %v794 = vpack.c.b16 %v682, %v678
        %v795 = vpack.c.b16 %v683, %v679
        %v796 = vpack.c.b16 %v688, %v684
        %v797 = vpack.c.b16 %v689, %v685
        %v798 = vpack.c.b16 %v690, %v686
        %v799 = vpack.c.b16 %v691, %v687
        %v800 = vpack.c.b16 %v696, %v692
        %v801 = vpack.c.b16 %v697, %v693
        %v802 = vpack.c.b16 %v698, %v694
        %v803 = vpack.c.b16 %v699, %v695
        %v804 = vpack.c.b16 %v704, %v700
        %v805 = vpack.c.b16 %v705, %v701
        %v806 = vpack.c.b16 %v706, %v702
        %v807 = vpack.c.b16 %v707, %v703
        %v808 = vpack.c.b16 %v712, %v708
        %v809 = vpack.c.b16 %v713, %v709
        %v810 = vpack.c.b16 %v714, %v710
        %v811 = vpack.c.b16 %v715, %v711
        %v812 = vpack.c.b16 %v720, %v716
        %v813 = vpack.c.b16 %v721, %v717
        %v814 = vpack.c.b16 %v722, %v718
        %v815 = vpack.c.b16 %v723, %v719
        %v816 = vpack.c.b16 %v728, %v724
        %v817 = vpack.c.b16 %v729, %v725
        %v818 = vpack.c.b16 %v730, %v726
        %v819 = vpack.c.b16 %v731, %v727
        %v820 = vpack.c.b16 %v736, %v732
        %v821 = vpack.c.b16 %v737, %v733
        %v822 = vpack.c.b16 %v738, %v734
        %v823 = vpack.c.b16 %v739, %v735
        %v824 = vpack.c.b16 %v744, %v740
        %v825 = vpack.c.b16 %v745, %v741
        %v826 = vpack.c.b16 %v746, %v742
        %v827 = vpack.c.b16 %v747, %v743
        %v828 = vpack.c.b16 %v752, %v748
        %v829 = vpack.c.b16 %v753, %v749
        %v830 = vpack.c.b16 %v754, %v750
        %v831 = vpack.c.b16 %v755, %v751
        %v832 = vpack.c.b16 %v760, %v756
        %v833 = vpack.c.b16 %v761, %v757
        %v834 = vpack.c.b16 %v762, %v758
        %v835 = vpack.c.b16 %v763, %v759
        %v836 = vpack.c.b16 %v768, %v764
        %v837 = vpack.c.b16 %v769, %v765
        %v838 = vpack.c.b16 %v770, %v766
        %v839 = vpack.c.b16 %v771, %v767
        %v840 = vpack.c.b16 %v776, %v772
        %v841 = vpack.c.b16 %v777, %v773
        %v842 = vpack.c.b16 %v778, %v774
        %v843 = vpack.c.b16 %v779, %v775
        %908 = vmatprep.subr.bf16.mxu0 %v781
        %909 = vmatpush1.bf16.msra.mxu0 %v780
        %910 = vmatprep.subr.bf16.mxu0 %v785
        %911 = vmatpush1.bf16.msra.mxu0 %v784
        %912 = vmatprep.subr.bf16.mxu0 %v789
        %913 = vmatpush1.bf16.msra.mxu0 %v788
        %914 = vmatprep.subr.bf16.mxu0 %v793
        %915 = vmatpush1.bf16.msra.mxu0 %v792
        %916 = vmatprep.subr.bf16.mxu0 %v797
        %917 = vmatpush1.bf16.msra.mxu0 %v796
        %918 = vmatprep.subr.bf16.mxu0 %v801
        %919 = vmatpush1.bf16.msra.mxu0 %v800
        %920 = vmatprep.subr.bf16.mxu0 %v805
        %921 = vmatpush1.bf16.msra.mxu0 %v804
        %922 = vmatprep.subr.bf16.mxu0 %v809
        %923 = vmatpush1.bf16.msra.mxu0 %v808
        %924 = vmatprep.subr.bf16.mxu0 %v813
        %925 = vmatpush1.bf16.msra.mxu0 %v812
        %926 = vmatprep.subr.bf16.mxu0 %v817
        %927 = vmatpush1.bf16.msra.mxu0 %v816
        %928 = vmatprep.subr.bf16.mxu0 %v821
        %929 = vmatpush1.bf16.msra.mxu0 %v820
        %930 = vmatprep.subr.bf16.mxu0 %v825
        %931 = vmatpush1.bf16.msra.mxu0 %v824
        %932 = vmatprep.subr.bf16.mxu0 %v829
        %933 = vmatpush1.bf16.msra.mxu0 %v828
        %934 = vmatprep.subr.bf16.mxu0 %v833
        %935 = vmatpush1.bf16.msra.mxu0 %v832
        %936 = vmatprep.subr.bf16.mxu0 %v837
        %937 = vmatpush1.bf16.msra.mxu0 %v836
        %938 = vmatprep.subr.bf16.mxu0 %v841
        %939 = vmatpush1.bf16.msra.mxu0 %v840
        %940 = vmatprep.mubr.bf16.mxu0 %v573
        %941 = vmatmul.mubr.bf16.gmra.mrb[0].mxu0 %v572
        %v942 = vpop.f32.mrb[0].mxu0
        %v943 = vadd.f32 0.0, %v942
        %v944 = vpop.f32.mrb[0].mxu0
        %v945 = vadd.f32 0.0, %v944
        %v946 = vpop.f32.mrb[0].mxu0
        %v947 = vadd.f32 0.0, %v946
        %v948 = vpop.f32.mrb[0].mxu0
        %v949 = vadd.f32 0.0, %v948
        %950 = vmatprep.mubr.bf16.mxu0 %v575
        %951 = vmatmul.mubr.bf16.gmra.mrb[0].mxu0 %v574
        %v952 = vpop.f32.mrb[0].mxu0
        %v953 = vadd.f32 0.0, %v952
        %v954 = vpop.f32.mrb[0].mxu0
        %v955 = vadd.f32 0.0, %v954
        %v956 = vpop.f32.mrb[0].mxu0
        %v957 = vadd.f32 0.0, %v956
        %v958 = vpop.f32.mrb[0].mxu0
        %v959 = vadd.f32 0.0, %v958
        %960 = vmatprep.mubr.bf16.mxu0 %v577
        %961 = vmatmul.mubr.bf16.gmra.mrb[0].mxu0 %v576
        %v962 = vpop.f32.mrb[0].mxu0
        %v963 = vadd.f32 0.0, %v962
        %v964 = vpop.f32.mrb[0].mxu0
        %v965 = vadd.f32 0.0, %v964
        %v966 = vpop.f32.mrb[0].mxu0
        %v967 = vadd.f32 0.0, %v966
        %v968 = vpop.f32.mrb[0].mxu0
        %v969 = vadd.f32 0.0, %v968
        %970 = vmatprep.mubr.bf16.mxu0 %v579
        %971 = vmatmul.mubr.bf16.gmra.mrb[0].mxu0 %v578
        %v972 = vpop.f32.mrb[0].mxu0
        %v973 = vadd.f32 0.0, %v972
        %v974 = vpop.f32.mrb[0].mxu0
        %v975 = vadd.f32 0.0, %v974
        %v976 = vpop.f32.mrb[0].mxu0
        %v977 = vadd.f32 0.0, %v976
        %v978 = vpop.f32.mrb[0].mxu0
        %v979 = vadd.f32 0.0, %v978
        %980 = vdwg.mxu0
        %981 = vmatprep.subr.bf16.mxu0 %v783
        %982 = vmatpush1.bf16.msra.mxu0 %v782
        %983 = vmatprep.subr.bf16.mxu0 %v787
        %984 = vmatpush1.bf16.msra.mxu0 %v786
        %985 = vmatprep.subr.bf16.mxu0 %v791
        %986 = vmatpush1.bf16.msra.mxu0 %v790
        %987 = vmatprep.subr.bf16.mxu0 %v795
        %988 = vmatpush1.bf16.msra.mxu0 %v794
        %989 = vmatprep.subr.bf16.mxu0 %v799
        %990 = vmatpush1.bf16.msra.mxu0 %v798
        %991 = vmatprep.subr.bf16.mxu0 %v803
        %992 = vmatpush1.bf16.msra.mxu0 %v802
        %993 = vmatprep.subr.bf16.mxu0 %v807
        %994 = vmatpush1.bf16.msra.mxu0 %v806
        %995 = vmatprep.subr.bf16.mxu0 %v811
        %996 = vmatpush1.bf16.msra.mxu0 %v810
        %997 = vmatprep.subr.bf16.mxu0 %v815
        %998 = vmatpush1.bf16.msra.mxu0 %v814
        %999 = vmatprep.subr.bf16.mxu0 %v819
        %1000 = vmatpush1.bf16.msra.mxu0 %v818
        %1001 = vmatprep.subr.bf16.mxu0 %v823
        %1002 = vmatpush1.bf16.msra.mxu0 %v822
        %1003 = vmatprep.subr.bf16.mxu0 %v827
        %1004 = vmatpush1.bf16.msra.mxu0 %v826
        %1005 = vmatprep.subr.bf16.mxu0 %v831
        %1006 = vmatpush1.bf16.msra.mxu0 %v830
        %1007 = vmatprep.subr.bf16.mxu0 %v835
        %1008 = vmatpush1.bf16.msra.mxu0 %v834
        %1009 = vmatprep.subr.bf16.mxu0 %v839
        %1010 = vmatpush1.bf16.msra.mxu0 %v838
        %1011 = vmatprep.subr.bf16.mxu0 %v843
        %1012 = vmatpush1.bf16.msra.mxu0 %v842
        %1013 = vmatprep.mubr.bf16.mxu0 %v573
        %1014 = vmatmul.mubr.bf16.gmra.mrb[0].mxu0 %v572
        %v1015 = vpop.f32.mrb[0].mxu0
        %v1016 = vadd.f32 0.0, %v1015
        %v1017 = vpop.f32.mrb[0].mxu0
        %v1018 = vadd.f32 0.0, %v1017
        %v1019 = vpop.f32.mrb[0].mxu0
        %v1020 = vadd.f32 0.0, %v1019
        %v1021 = vpop.f32.mrb[0].mxu0
        %v1022 = vadd.f32 0.0, %v1021
        %1023 = vmatprep.mubr.bf16.mxu0 %v575
        %1024 = vmatmul.mubr.bf16.gmra.mrb[0].mxu0 %v574
        %v1025 = vpop.f32.mrb[0].mxu0
        %v1026 = vadd.f32 0.0, %v1025
        %v1027 = vpop.f32.mrb[0].mxu0
        %v1028 = vadd.f32 0.0, %v1027
        %v1029 = vpop.f32.mrb[0].mxu0
        %v1030 = vadd.f32 0.0, %v1029
        %v1031 = vpop.f32.mrb[0].mxu0
        %v1032 = vadd.f32 0.0, %v1031
        %1033 = vmatprep.mubr.bf16.mxu0 %v577
        %1034 = vmatmul.mubr.bf16.gmra.mrb[0].mxu0 %v576
        %v1035 = vpop.f32.mrb[0].mxu0
        %v1036 = vadd.f32 0.0, %v1035
        %v1037 = vpop.f32.mrb[0].mxu0
        %v1038 = vadd.f32 0.0, %v1037
        %v1039 = vpop.f32.mrb[0].mxu0
        %v1040 = vadd.f32 0.0, %v1039
        %v1041 = vpop.f32.mrb[0].mxu0
        %v1042 = vadd.f32 0.0, %v1041
        %1043 = vmatprep.mubr.bf16.mxu0 %v579
        %1044 = vmatmul.mubr.bf16.gmra.mrb[0].mxu0 %v578
        %v1045 = vpop.f32.mrb[0].mxu0
        %v1046 = vadd.f32 0.0, %v1045
        %v1047 = vpop.f32.mrb[0].mxu0
        %v1048 = vadd.f32 0.0, %v1047
        %v1049 = vpop.f32.mrb[0].mxu0
        %v1050 = vadd.f32 0.0, %v1049
        %v1051 = vpop.f32.mrb[0].mxu0
        %v1052 = vadd.f32 0.0, %v1051
        %1053 = vdwg.mxu0
        %v1054 = vadd.f32 %v444, %v943
        %v1055 = vadd.f32 %v445, %v945
        %v1056 = vadd.f32 %v446, %v1016
        %v1057 = vadd.f32 %v447, %v1018
        %v1058 = vadd.f32 %v448, %v947
        %v1059 = vadd.f32 %v449, %v949
        %v1060 = vadd.f32 %v450, %v1020
        %v1061 = vadd.f32 %v451, %v1022
        %v1062 = vadd.f32 %v452, %v953
        %v1063 = vadd.f32 %v453, %v955
        %v1064 = vadd.f32 %v454, %v1026
        %v1065 = vadd.f32 %v455, %v1028
        %v1066 = vadd.f32 %v456, %v957
        %v1067 = vadd.f32 %v457, %v959
        %v1068 = vadd.f32 %v458, %v1030
        %v1069 = vadd.f32 %v459, %v1032
        %v1070 = vadd.f32 %v460, %v963
        %v1071 = vadd.f32 %v461, %v965
        %v1072 = vadd.f32 %v462, %v1036
        %v1073 = vadd.f32 %v463, %v1038
        %v1074 = vadd.f32 %v464, %v967
        %v1075 = vadd.f32 %v465, %v969
        %v1076 = vadd.f32 %v466, %v1040
        %v1077 = vadd.f32 %v467, %v1042
        %v1078 = vadd.f32 %v468, %v973
        %v1079 = vadd.f32 %v469, %v975
        %v1080 = vadd.f32 %v470, %v1046
        %v1081 = vadd.f32 %v471, %v1048
        %v1082 = vadd.f32 %v472, %v977
        %v1083 = vadd.f32 %v473, %v979
        %v1084 = vadd.f32 %v474, %v1050
        %v1085 = vadd.f32 %v475, %v1052
        %1086 = vst [vmem:[#allocation2] sm:$0xff] %v1054
        %1087 = vst [vmem:[#allocation2 + $0x8] sm:$0xff] %v1055
        %1088 = vst [vmem:[#allocation2 + $0x10] sm:$0xff] %v1056
        %1089 = vst [vmem:[#allocation2 + $0x18] sm:$0xff] %v1057
        %1090 = vst [vmem:[#allocation2 + $0x20] sm:$0xff] %v1058
        %1091 = vst [vmem:[#allocation2 + $0x28] sm:$0xff] %v1059
        %1092 = vst [vmem:[#allocation2 + $0x30] sm:$0xff] %v1060
        %1093 = vst [vmem:[#allocation2 + $0x38] sm:$0xff] %v1061
        %1094 = vst [vmem:[#allocation2 + $0x40] sm:$0xff] %v1062
        %1095 = vst [vmem:[#allocation2 + $0x48] sm:$0xff] %v1063
        %1096 = vst [vmem:[#allocation2 + $0x50] sm:$0xff] %v1064
        %1097 = vst [vmem:[#allocation2 + $0x58] sm:$0xff] %v1065
        %1098 = vst [vmem:[#allocation2 + $0x60] sm:$0xff] %v1066
        %1099 = vst [vmem:[#allocation2 + $0x68] sm:$0xff] %v1067
        %1100 = vst [vmem:[#allocation2 + $0x70] sm:$0xff] %v1068
        %1101 = vst [vmem:[#allocation2 + $0x78] sm:$0xff] %v1069
        %1102 = vst [vmem:[#allocation2 + $0x80] sm:$0xff] %v1070
        %1103 = vst [vmem:[#allocation2 + $0x88] sm:$0xff] %v1071
        %1104 = vst [vmem:[#allocation2 + $0x90] sm:$0xff] %v1072
        %1105 = vst [vmem:[#allocation2 + $0x98] sm:$0xff] %v1073
        %1106 = vst [vmem:[#allocation2 + $0xa0] sm:$0xff] %v1074
        %1107 = vst [vmem:[#allocation2 + $0xa8] sm:$0xff] %v1075
        %1108 = vst [vmem:[#allocation2 + $0xb0] sm:$0xff] %v1076
        %1109 = vst [vmem:[#allocation2 + $0xb8] sm:$0xff] %v1077
        %1110 = vst [vmem:[#allocation2 + $0xc0] sm:$0xff] %v1078
        %1111 = vst [vmem:[#allocation2 + $0xc8] sm:$0xff] %v1079
        %1112 = vst [vmem:[#allocation2 + $0xd0] sm:$0xff] %v1080
        %1113 = vst [vmem:[#allocation2 + $0xd8] sm:$0xff] %v1081
        %1114 = vst [vmem:[#allocation2 + $0xe0] sm:$0xff] %v1082
        %1115 = vst [vmem:[#allocation2 + $0xe8] sm:$0xff] %v1083
        %1116 = vst [vmem:[#allocation2 + $0xf0] sm:$0xff] %v1084
        %1117 = vst [vmem:[#allocation2 + $0xf8] sm:$0xff] %v1085
        // Predicated region
        $region60: #{matmul_bias.1} parent=50 // pred_check
          %p1118 = pneg %p408
        $region61: #{matmul_bias.1} parent=50 // pred_check_branch
          %1120 = sbr.rel (%p1118) target = $region63
        $region62: #{matmul_bias.1} parent=50 // pred_region
          %v1121 = vld [vmem:[#allocation2] sm:$0xff]
          %v1122 = vld [vmem:[#allocation2 + $0x8] sm:$0xff]
          %v1123 = vld [vmem:[#allocation2 + $0x10] sm:$0xff]
          %v1124 = vld [vmem:[#allocation2 + $0x18] sm:$0xff]
          %v1125 = vld [vmem:[#allocation2 + $0x20] sm:$0xff]
          %v1126 = vld [vmem:[#allocation2 + $0x28] sm:$0xff]
          %v1127 = vld [vmem:[#allocation2 + $0x30] sm:$0xff]
          %v1128 = vld [vmem:[#allocation2 + $0x38] sm:$0xff]
          %v1129 = vld [vmem:[#allocation2 + $0x40] sm:$0xff]
          %v1130 = vld [vmem:[#allocation2 + $0x48] sm:$0xff]
          %v1131 = vld [vmem:[#allocation2 + $0x50] sm:$0xff]
          %v1132 = vld [vmem:[#allocation2 + $0x58] sm:$0xff]
          %v1133 = vld [vmem:[#allocation2 + $0x60] sm:$0xff]
          %v1134 = vld [vmem:[#allocation2 + $0x68] sm:$0xff]
          %v1135 = vld [vmem:[#allocation2 + $0x70] sm:$0xff]
          %v1136 = vld [vmem:[#allocation2 + $0x78] sm:$0xff]
          %v1137 = vld [vmem:[#allocation2 + $0x80] sm:$0xff]
          %v1138 = vld [vmem:[#allocation2 + $0x88] sm:$0xff]
          %v1139 = vld [vmem:[#allocation2 + $0x90] sm:$0xff]
          %v1140 = vld [vmem:[#allocation2 + $0x98] sm:$0xff]
          %v1141 = vld [vmem:[#allocation2 + $0xa0] sm:$0xff]
          %v1142 = vld [vmem:[#allocation2 + $0xa8] sm:$0xff]
          %v1143 = vld [vmem:[#allocation2 + $0xb0] sm:$0xff]
          %v1144 = vld [vmem:[#allocation2 + $0xb8] sm:$0xff]
          %v1145 = vld [vmem:[#allocation2 + $0xc0] sm:$0xff]
          %v1146 = vld [vmem:[#allocation2 + $0xc8] sm:$0xff]
          %v1147 = vld [vmem:[#allocation2 + $0xd0] sm:$0xff]
          %v1148 = vld [vmem:[#allocation2 + $0xd8] sm:$0xff]
          %v1149 = vld [vmem:[#allocation2 + $0xe0] sm:$0xff]
          %v1150 = vld [vmem:[#allocation2 + $0xe8] sm:$0xff]
          %v1151 = vld [vmem:[#allocation2 + $0xf0] sm:$0xff]
          %v1152 = vld [vmem:[#allocation2 + $0xf8] sm:$0xff]
          %v1153 = vld [vmem:[%s404] sm:$0xff]
          %v1154 = vld [vmem:[%s404 + $0x8] sm:$0xff]
          %v1155 = vld [vmem:[%s404 + $0x10] sm:$0xff]
          %v1156 = vld [vmem:[%s404 + $0x18] sm:$0xff]
          %v1157 = vld [vmem:[%s404 + $0x20] sm:$0xff]
          %v1158 = vld [vmem:[%s404 + $0x28] sm:$0xff]
          %v1159 = vld [vmem:[%s404 + $0x30] sm:$0xff]
          %v1160 = vld [vmem:[%s404 + $0x38] sm:$0xff]
          %1162 = vset.pattern.permute.xlu0 0
          %1163 = vperm.xlu0 %1162, %v1153
          %v1164 = vpop.permute.xlu0 %1163
          %1167 = vset.pattern.permute.xlu0 0
          %1168 = vperm.xlu0 %1167, %v1154
          %v1169 = vpop.permute.xlu0 %1168
          %1172 = vset.pattern.permute.xlu0 0
          %1173 = vperm.xlu0 %1172, %v1155
          %v1174 = vpop.permute.xlu0 %1173
          %1177 = vset.pattern.permute.xlu0 0
          %1178 = vperm.xlu0 %1177, %v1156
          %v1179 = vpop.permute.xlu0 %1178
          %1182 = vset.pattern.permute.xlu0 0
          %1183 = vperm.xlu0 %1182, %v1157
          %v1184 = vpop.permute.xlu0 %1183
          %1187 = vset.pattern.permute.xlu0 0
          %1188 = vperm.xlu0 %1187, %v1158
          %v1189 = vpop.permute.xlu0 %1188
          %1192 = vset.pattern.permute.xlu0 0
          %1193 = vperm.xlu0 %1192, %v1159
          %v1194 = vpop.permute.xlu0 %1193
          %1197 = vset.pattern.permute.xlu0 0
          %1198 = vperm.xlu0 %1197, %v1160
          %v1199 = vpop.permute.xlu0 %1198
          %v1201 = vadd.f32 %v1121, %v1164
          %v1202 = vadd.f32 %v1122, %v1164
          %v1203 = vadd.f32 %v1123, %v1164
          %v1204 = vadd.f32 %v1124, %v1164
          %v1205 = vadd.f32 %v1125, %v1169
          %v1206 = vadd.f32 %v1126, %v1169
          %v1207 = vadd.f32 %v1127, %v1169
          %v1208 = vadd.f32 %v1128, %v1169
          %v1209 = vadd.f32 %v1129, %v1174
          %v1210 = vadd.f32 %v1130, %v1174
          %v1211 = vadd.f32 %v1131, %v1174
          %v1212 = vadd.f32 %v1132, %v1174
          %v1213 = vadd.f32 %v1133, %v1179
          %v1214 = vadd.f32 %v1134, %v1179
          %v1215 = vadd.f32 %v1135, %v1179
          %v1216 = vadd.f32 %v1136, %v1179
          %v1217 = vadd.f32 %v1137, %v1184
          %v1218 = vadd.f32 %v1138, %v1184
          %v1219 = vadd.f32 %v1139, %v1184
          %v1220 = vadd.f32 %v1140, %v1184
          %v1221 = vadd.f32 %v1141, %v1189
          %v1222 = vadd.f32 %v1142, %v1189
          %v1223 = vadd.f32 %v1143, %v1189
          %v1224 = vadd.f32 %v1144, %v1189
          %v1225 = vadd.f32 %v1145, %v1194
          %v1226 = vadd.f32 %v1146, %v1194
          %v1227 = vadd.f32 %v1147, %v1194
          %v1228 = vadd.f32 %v1148, %v1194
          %v1229 = vadd.f32 %v1149, %v1199
          %v1230 = vadd.f32 %v1150, %v1199
          %v1231 = vadd.f32 %v1151, %v1199
          %v1232 = vadd.f32 %v1152, %v1199
          %v1233 = vmax.f32 %v1201, 0.0
          %v1234 = vmax.f32 %v1202, 0.0
          %v1235 = vmax.f32 %v1203, 0.0
          %v1236 = vmax.f32 %v1204, 0.0
          %v1237 = vmax.f32 %v1205, 0.0
          %v1238 = vmax.f32 %v1206, 0.0
          %v1239 = vmax.f32 %v1207, 0.0
          %v1240 = vmax.f32 %v1208, 0.0
          %v1241 = vmax.f32 %v1209, 0.0
          %v1242 = vmax.f32 %v1210, 0.0
          %v1243 = vmax.f32 %v1211, 0.0
          %v1244 = vmax.f32 %v1212, 0.0
          %v1245 = vmax.f32 %v1213, 0.0
          %v1246 = vmax.f32 %v1214, 0.0
          %v1247 = vmax.f32 %v1215, 0.0
          %v1248 = vmax.f32 %v1216, 0.0
          %v1249 = vmax.f32 %v1217, 0.0
          %v1250 = vmax.f32 %v1218, 0.0
          %v1251 = vmax.f32 %v1219, 0.0
          %v1252 = vmax.f32 %v1220, 0.0
          %v1253 = vmax.f32 %v1221, 0.0
          %v1254 = vmax.f32 %v1222, 0.0
          %v1255 = vmax.f32 %v1223, 0.0
          %v1256 = vmax.f32 %v1224, 0.0
          %v1257 = vmax.f32 %v1225, 0.0
          %v1258 = vmax.f32 %v1226, 0.0
          %v1259 = vmax.f32 %v1227, 0.0
          %v1260 = vmax.f32 %v1228, 0.0
          %v1261 = vmax.f32 %v1229, 0.0
          %v1262 = vmax.f32 %v1230, 0.0
          %v1263 = vmax.f32 %v1231, 0.0
          %v1264 = vmax.f32 %v1232, 0.0
          %v1265 = vpack.c.bf16 %v1237, %v1233
          %v1266 = vpack.c.bf16 %v1238, %v1234
          %v1267 = vpack.c.bf16 %v1239, %v1235
          %v1268 = vpack.c.bf16 %v1240, %v1236
          %v1269 = vpack.c.bf16 %v1245, %v1241
          %v1270 = vpack.c.bf16 %v1246, %v1242
          %v1271 = vpack.c.bf16 %v1247, %v1243
          %v1272 = vpack.c.bf16 %v1248, %v1244
          %v1273 = vpack.c.bf16 %v1253, %v1249
          %v1274 = vpack.c.bf16 %v1254, %v1250
          %v1275 = vpack.c.bf16 %v1255, %v1251
          %v1276 = vpack.c.bf16 %v1256, %v1252
          %v1277 = vpack.c.bf16 %v1261, %v1257
          %v1278 = vpack.c.bf16 %v1262, %v1258
          %v1279 = vpack.c.bf16 %v1263, %v1259
          %v1280 = vpack.c.bf16 %v1264, %v1260
          %v1297 = vunpack.c.l.b16 %v1265
          %v1298 = vunpack.c.l.b16 %v1266
          %v1299 = vunpack.c.l.b16 %v1267
          %v1300 = vunpack.c.l.b16 %v1268
          %v1301 = vunpack.c.h.b16 %v1265
          %v1302 = vunpack.c.h.b16 %v1266
          %v1303 = vunpack.c.h.b16 %v1267
          %v1304 = vunpack.c.h.b16 %v1268
          %v1305 = vunpack.c.l.b16 %v1269
          %v1306 = vunpack.c.l.b16 %v1270
          %v1307 = vunpack.c.l.b16 %v1271
          %v1308 = vunpack.c.l.b16 %v1272
          %v1309 = vunpack.c.h.b16 %v1269
          %v1310 = vunpack.c.h.b16 %v1270
          %v1311 = vunpack.c.h.b16 %v1271
          %v1312 = vunpack.c.h.b16 %v1272
          %v1313 = vunpack.c.l.b16 %v1273
          %v1314 = vunpack.c.l.b16 %v1274
          %v1315 = vunpack.c.l.b16 %v1275
          %v1316 = vunpack.c.l.b16 %v1276
          %v1317 = vunpack.c.h.b16 %v1273
          %v1318 = vunpack.c.h.b16 %v1274
          %v1319 = vunpack.c.h.b16 %v1275
          %v1320 = vunpack.c.h.b16 %v1276
          %v1321 = vunpack.c.l.b16 %v1277
          %v1322 = vunpack.c.l.b16 %v1278
          %v1323 = vunpack.c.l.b16 %v1279
          %v1324 = vunpack.c.l.b16 %v1280
          %v1325 = vunpack.c.h.b16 %v1277
          %v1326 = vunpack.c.h.b16 %v1278
          %v1327 = vunpack.c.h.b16 %v1279
          %v1328 = vunpack.c.h.b16 %v1280
          %v1329 = vpack.c.b16 %v1298, %v1297
          %v1330 = vpack.c.b16 %v1300, %v1299
          %v1331 = vpack.c.b16 %v1302, %v1301
          %v1332 = vpack.c.b16 %v1304, %v1303
          %v1333 = vpack.c.b16 %v1306, %v1305
          %v1334 = vpack.c.b16 %v1308, %v1307
          %v1335 = vpack.c.b16 %v1310, %v1309
          %v1336 = vpack.c.b16 %v1312, %v1311
          %v1337 = vpack.c.b16 %v1314, %v1313
          %v1338 = vpack.c.b16 %v1316, %v1315
          %v1339 = vpack.c.b16 %v1318, %v1317
          %v1340 = vpack.c.b16 %v1320, %v1319
          %v1341 = vpack.c.b16 %v1322, %v1321
          %v1342 = vpack.c.b16 %v1324, %v1323
          %v1343 = vpack.c.b16 %v1326, %v1325
          %v1344 = vpack.c.b16 %v1328, %v1327
          %1361 = vst [vmem:[%s385] sm:$0xff] %v1329
          %1362 = vst [vmem:[%s385 + $0x8] sm:$0xff] %v1330
          %1363 = vst [vmem:[%s385 + $0x10] sm:$0xff] %v1331
          %1364 = vst [vmem:[%s385 + $0x18] sm:$0xff] %v1332
          %1365 = vst [vmem:[%s385 + $0x20] sm:$0xff] %v1333
          %1366 = vst [vmem:[%s385 + $0x28] sm:$0xff] %v1334
          %1367 = vst [vmem:[%s385 + $0x30] sm:$0xff] %v1335
          %1368 = vst [vmem:[%s385 + $0x38] sm:$0xff] %v1336
          %1369 = vst [vmem:[%s385 + $0x40] sm:$0xff] %v1337
          %1370 = vst [vmem:[%s385 + $0x48] sm:$0xff] %v1338
          %1371 = vst [vmem:[%s385 + $0x50] sm:$0xff] %v1339
          %1372 = vst [vmem:[%s385 + $0x58] sm:$0xff] %v1340
          %1373 = vst [vmem:[%s385 + $0x60] sm:$0xff] %v1341
          %1374 = vst [vmem:[%s385 + $0x68] sm:$0xff] %v1342
          %1375 = vst [vmem:[%s385 + $0x70] sm:$0xff] %v1343
          %1376 = vst [vmem:[%s385 + $0x78] sm:$0xff] %v1344
        $region63: #{matmul_bias.1} parent=50 // pred_fallthru
          _
        %s1377 = sand.u32 %s128, 1
        %s1378 = scalar_lea.sflag [#allocation5], %s1377
        %s1379 = sand.u32 %s128, 1
        %s1380 = smul.addr %s1379, 128
        %s1381 = scalar_lea.vmem [#allocation4], %s1380
        // Predicated region
        $region64: #{matmul_bias.1} parent=50 // pred_check
          %p1382 = pneg %p138
        $region65: #{matmul_bias.1} parent=50 // pred_check_branch
          %1384 = sbr.rel (%p1382) target = $region67
        $region66: #{matmul_bias.1} parent=50 // pred_region
          %s1385 = smul.u32 8, %s22
          %s1386 = smul.u32 4, %s23
          %s1388 = ssub.s32 2048, 2048
          %1389 = vsyncadd %s1378, %s1388
          %s1390 = smul.addr %s1385, 16
          %s1391 = sadd.s32 %s1386, %s1390
          %s1392 = smul.addr %s1391, 64
          %s1393 = scalar_lea.hbm %s3, %s1392
          %s1394 = sshll.u32 %s1381, 4
          %s1395 = int_to_ptr.vmem [resolvable:$true] %s1394
          %1400 = dma.vmem_to_hbm [thread:$0]  %s1395, 2048, %s1393, %s1378, 256, 1024, 16
        $region67: #{matmul_bias.1} parent=50 // pred_fallthru
          _
      $region51: #{matmul_bias.1} parent=5 // pred_fallthru
        _
      %p1401 = scmp.le.s32.totalorder 2, %s12
      // Predicated region
      $region68: #{matmul_bias.1} parent=5 // pred_check
        %p1402 = pneg %p1401
      $region69: #{matmul_bias.1} parent=5 // pred_check_branch
        %1404 = sbr.rel (%p1402) target = $region71
      $region70: #{matmul_bias.1} parent=5 // pred_region
        %s1405 = ssub.s32 %s12, 2
        // Predicated region
        $region72: #{matmul_bias.1} parent=70 // pred_check
          %p1406 = pneg %p144
        $region73: #{matmul_bias.1} parent=70 // pred_check_branch
          %1408 = sbr.rel (%p1406) target = $region75
        $region74: #{matmul_bias.1} parent=70 // pred_region
          %s1409 = sand.u32 %s129, 1
          %s1410 = scalar_lea.sflag [#allocation5], %s1409
          %s1411 = sand.u32 %s129, 1
          %s1412 = smul.addr %s1411, 128
          %s1413 = scalar_lea.vmem [#allocation4], %s1412
          %1414 = dma.done %s1410, 2048
        $region75: #{matmul_bias.1} parent=70 // pred_fallthru
          _
      $region71: #{matmul_bias.1} parent=5 // pred_fallthru
        _
    $region6: #{matmul_bias.1} parent=1 // loop_footer
      %s16 = sadd.s32 1, %s12
    $region7: #{matmul_bias.1} parent=1 // loop_footer_branch
      %11 = sbr.rel target = $region3
    $region8: #{matmul_bias.1} parent=1 // loop_exit
      _
    %1415 = vsyncpa [#allocation5], 1
    %s1416 = scalar_lea.sflag [#allocation5], 1
    %1417 = vsyncpa %s1416, 1

</llo_original>
